<compile_context>
chip_gen: v5e
topology: v5e:2x2
jax: 0.10.0
libtpu: 0.0.40
codegen_flags: <defaults>
</compile_context>

<pallas_src>
import numpy as np
import jax
import jax.numpy as jnp
from jax import lax
from jax.experimental import pallas as pl
from jax.experimental.pallas import tpu as pltpu
from typing import NamedTuple, Tuple


_VMEM = pl.BlockSpec(memory_space=pltpu.MemorySpace.VMEM)


def _pad8(n):
    return -(-n // 8) * 8


class Meta(NamedTuple):
    Vp: int                      # char-vocab rows (padded to 8) in the slab
    Hc: int                      # char hidden dim
    E: int                       # word embedding dim
    H: int                       # shared hidden dim
    DC: int                      # domain count
    dm_pad: int                  # lane width reserved for dm logits (= E+2Hc)
    offs128: Tuple[int, ...]     # row offsets inside the "narrow" weight slab
    offs256: Tuple[int, ...]     # row offsets inside the 8H-wide weight slab


# ----------------------------- fused kernel --------------------------------

def _bilstm_step(xg, h, c, whh_bd, H2):
    """One interleaved fwd+bwd LSTM step on the combined (N, 2H) state.

    Gate columns are grouped [i_f i_b | f_f f_b | o_f o_b | g_f g_b], so a
    single sigmoid covers i/f/o of both directions and tanh covers only g.
    """
    gates = xg + jnp.dot(h, whh_bd, preferred_element_type=jnp.float32)
    sig = jax.nn.sigmoid(gates[:, :3 * H2])
    g = jnp.tanh(gates[:, 3 * H2:])
    i = sig[:, :H2]
    f = sig[:, H2:2 * H2]
    o = sig[:, 2 * H2:3 * H2]
    c_new = f * c + i * g
    h_new = o * jnp.tanh(c_new)
    return h_new, c_new


def _build_kernel(T, B, L, NW, meta):
    F32 = jnp.float32
    Vp, Hc, E, H, DC = meta.Vp, meta.Hc, meta.E, meta.H, meta.DC
    H2c, H8c = 2 * Hc, 8 * Hc
    H2, H8 = 2 * H, 8 * H
    TB = T * B
    dm_pad = meta.dm_pad
    (o_cemb, o_cwhh, o_prjw, o_prjb, o_dw1, o_db1,
     o_dw2, o_db2, o_fmc, o_hm) = meta.offs128
    (o_swx, o_sbx, o_swhh, o_fms) = meta.offs256

    def kernel(idx_ref, word_ref, wA_ref, wB_ref, out_ref):
        # ---- weights / masks: static slices from the two packed slabs ----
        c_emb_gates = wA_ref[o_cemb:o_cemb + Vp, :H8c]       # (Vp, 8Hc)
        c_whh_bd = wA_ref[o_cwhh:o_cwhh + H2c, :H8c]         # (2Hc, 8Hc)
        prj_w = wA_ref[o_prjw:o_prjw + H2, :H2]              # (2H, 2H)
        prj_b = wA_ref[o_prjb:o_prjb + 1, :H2]               # (1, 2H)
        dm_w1 = wA_ref[o_dw1:o_dw1 + H2, :H]                 # (2H, H)
        dm_b1 = wA_ref[o_db1:o_db1 + 1, :H]                  # (1, H)
        dm_w2 = wA_ref[o_dw2:o_dw2 + H, :dm_pad]             # (H, dm_pad)
        dm_b2 = wA_ref[o_db2:o_db2 + 1, :dm_pad]             # (1, dm_pad)
        fmask_c = wA_ref[o_fmc:o_fmc + 1, :H8c] > 0.5        # fwd gate cols
        half_mask = wA_ref[o_hm:o_hm + 1, :H2] > 0.5         # fwd half of h
        s_wx = wB_ref[o_swx:o_swx + (E + H2c), :]            # (E+2Hc, 8H)
        s_bx = wB_ref[o_sbx:o_sbx + 1, :]                    # (1, 8H)
        s_whh_bd = wB_ref[o_swhh:o_swhh + H2, :]             # (2H, 8H)
        fmask_s = wB_ref[o_fms:o_fms + 1, :] > 0.5           # fwd gate cols

        # ---- char BiLSTM: embedding lookup folded into the hoisted input
        #      projection (one-hot @ (emb @ Wx + b)); fwd+bwd interleaved ----
        cidx = idx_ref[0:L * NW, :]                          # (L*NW, 1)
        onehot_c = (cidx == lax.broadcasted_iota(
            jnp.int32, (L * NW, Vp), 1)).astype(F32)
        cg = jnp.dot(onehot_c, c_emb_gates,
                     preferred_element_type=F32)             # (L*NW, 8Hc)
        h_c = jnp.zeros((NW, H2c), F32)
        c_c = jnp.zeros((NW, H2c), F32)
        # TODO(synk): pack_padded_sequence treated as identity (all word
        # lengths == L); variable lengths need masked h/c updates per step.
        for s in range(L):                                   # fully unrolled
            tb = L - 1 - s
            xg = jnp.where(fmask_c, cg[s * NW:(s + 1) * NW, :],
                           cg[tb * NW:(tb + 1) * NW, :])
            h_c, c_c = _bilstm_step(xg, h_c, c_c, c_whh_bd, H2c)
        # h_c == [h_fwd(last char) | h_bwd(first char)]: nn.LSTM h_n layout.

        # ---- index_select(0, wordIvtIdx) as ONE permutation matmul ----
        widx = idx_ref[L * NW:L * NW + NW, :]                # (NW, 1)
        perm = (widx == lax.broadcasted_iota(
            jnp.int32, (NW, NW), 1)).astype(F32)
        hp = jnp.dot(perm, h_c, preferred_element_type=F32)  # (NW, 2Hc)

        # ---- packedWordOut = [word | char_fwd | char_bwd], single concat ---
        packed = jnp.concatenate([word_ref[...], hp], axis=1)   # (TB, E+2Hc)

        # ---- shared BiLSTM: one hoisted (TB,E+2Hc)@(E+2Hc,8H) projection ---
        sg = jnp.dot(packed, s_wx, preferred_element_type=F32) + s_bx
        h_s = jnp.zeros((B, H2), F32)
        c_s = jnp.zeros((B, H2), F32)
        h_sum = jnp.zeros((B, H2), F32)
        h_steps = []
        for s in range(T):                                   # fully unrolled
            tb = T - 1 - s
            xg = jnp.where(fmask_s, sg[s * B:(s + 1) * B, :],
                           sg[tb * B:(tb + 1) * B, :])
            h_s, c_s = _bilstm_step(xg, h_s, c_s, s_whh_bd, H2)
            h_steps.append(h_s)
            h_sum = h_sum + h_s
        # Re-pair fwd(t) with bwd(t): step t holds [h_f(t) | h_b(T-1-t)].
        h_time = [jnp.where(half_mask, h_steps[t], h_steps[T - 1 - t])
                  for t in range(T)]
        h_stack = jnp.concatenate(h_time, axis=0)            # (TB, 2H)

        # ---- epilogue: rnn_prj + utterance sum + domain classifier ----
        proj = jnp.dot(h_stack, prj_w, preferred_element_type=F32) + prj_b
        # uttEncOut = sum_t proj(h_t) = proj(sum_t h_t) + T*b (affine prj).
        utt = (jnp.dot(h_sum, prj_w, preferred_element_type=F32)
               + jnp.float32(T) * prj_b)                     # (B, 2H)
        h1 = jnp.dot(utt, dm_w1, preferred_element_type=F32) + dm_b1
        h1 = jnp.where(h1 > 0, h1, 0.2 * h1)                 # LeakyReLU(0.2)
        dm = jnp.dot(h1, dm_w2, preferred_element_type=F32) + dm_b2

        # ---- lane-dense combined output slab (width E+2Hc+2H = 128) ----
        out_ref[0:TB, :] = jnp.concatenate([packed, proj], axis=1)
        out_ref[TB:TB + B, :] = jnp.concatenate([utt, dm], axis=1)

    return kernel


# ----------------------------- wrapper --------------------------------------

def shared_model_forward(prep, meta, char_batch, word_ivt_idx, word_out):
    """Replicates SharedModel.forward for the documented config.

    Returns finalOut = [packedWordOut, sharedRnnOut, uttEncOut, dmLogits].
    """
    T, B, E = word_out.shape
    L, NW = char_batch.shape
    assert NW == T * B and E == meta.E
    Hc, H, DC = meta.Hc, meta.H, meta.DC
    TB = T * B
    pw = E + 2 * Hc
    out_w = pw + 2 * H

    idx_slab = jnp.concatenate(
        [char_batch.reshape(L * NW, 1), word_ivt_idx.reshape(NW, 1)],
        axis=0).astype(jnp.int32)

    kernel = _build_kernel(T, B, L, NW, meta)
    out = pl.pallas_call(
        kernel,
        out_shape=jax.ShapeDtypeStruct((TB + B, out_w), jnp.float32),
        in_specs=[_VMEM] * 4,
        out_specs=_VMEM,
    )(idx_slab, word_out.reshape(TB, E), prep["wA"], prep["wB"])

    packed = out[:TB, :pw].reshape(T, B, pw)
    shared = out[:TB, pw:pw + 2 * H].reshape(T, B, 2 * H)
    utt = out[TB:, :2 * H]
    dm = out[TB:, 2 * H:2 * H + DC]
    return [packed, shared, utt, dm]


# ----------------------- params (PyTorch convention) ------------------------

def init_params(key, char_vocab, char_emb_dim, char_hid, emb_dim, hid_dim,
                domain_cnt):
    ks = iter(jax.random.split(key, 24))

    def nrm(shape, scale):
        return scale * jax.random.normal(next(ks), shape, dtype=jnp.float32)

    # char embedding: xavier normal, pad(0)/unk(1) rows zeroed
    xav = (2.0 / (char_vocab + char_emb_dim)) ** 0.5
    char_emb = nrm((char_vocab, char_emb_dim), xav)
    char_emb = char_emb.at[0].set(0.0).at[1].set(0.0)

    def lstm_params(in_dim, hid):
        s = 1.0 / (hid ** 0.5)
        return {
            "wih_f": nrm((4 * hid, in_dim), s), "whh_f": nrm((4 * hid, hid), s),
            "bih_f": nrm((4 * hid,), s),        "bhh_f": nrm((4 * hid,), s),
            "wih_b": nrm((4 * hid, in_dim), s), "whh_b": nrm((4 * hid, hid), s),
            "bih_b": nrm((4 * hid,), s),        "bhh_b": nrm((4 * hid,), s),
        }

    shared_in = emb_dim + 2 * char_hid
    utt_dim = 2 * hid_dim
    return {
        "char_emb": char_emb,
        "char_lstm": lstm_params(char_emb_dim, char_hid),
        "shared_lstm": lstm_params(shared_in, hid_dim),
        "prj_w": nrm((utt_dim, utt_dim), 0.1),
        "prj_b": nrm((utt_dim,), 0.1),
        "dm_w1": nrm((hid_dim, utt_dim), 0.1),
        "dm_b1": nrm((hid_dim,), 0.1),
        "dm_w2": nrm((domain_cnt, hid_dim), 0.1),
        "dm_b2": jnp.zeros((domain_cnt,), jnp.float32),  # bias.data.zero_()
    }


def _combine_bilstm(p, H):
    """Combined-direction, gate-grouped BiLSTM weights.

    Column layout (width 8H): [i_f i_b | f_f f_b | o_f o_b | g_f g_b]
    (PyTorch row order in weight_ih/weight_hh is i, f, g, o).  The recurrent
    matrix is block-diagonal so [h_f | h_b] @ whh_bd does both directions in
    one matmul push.
    """
    order = (0, 1, 3, 2)                     # -> i, f, o, g
    Z = jnp.zeros((H, H), jnp.float32)

    def gate(w, gi):
        return w[gi * H:(gi + 1) * H]

    b_f = p["bih_f"] + p["bhh_f"]
    b_b = p["bih_b"] + p["bhh_b"]
    wx_cols, bx_cols, whh_cols = [], [], []
    for gi in order:
        wx_cols += [gate(p["wih_f"], gi).T, gate(p["wih_b"], gi).T]
        bx_cols += [gate(b_f, gi), gate(b_b, gi)]
        whh_cols += [jnp.concatenate([gate(p["whh_f"], gi).T, Z], axis=0),
                     jnp.concatenate([Z, gate(p["whh_b"], gi).T], axis=0)]
    wx = jnp.concatenate(wx_cols, axis=1)            # (in, 8H)
    bx = jnp.concatenate(bx_cols).reshape(1, -1)     # (1, 8H)
    whh_bd = jnp.concatenate(whh_cols, axis=1)       # (2H, 8H), block-diagonal
    return wx, bx, whh_bd


def _pack_rows(blocks, width, dtype=jnp.float32):
    """Row-stack 2-D blocks into one (rows, width) slab.  Each block is
    zero-padded to `width` lanes and to a multiple of 8 rows so every
    in-kernel slice starts sublane-aligned.  Returns (slab, row_offsets)."""
    padded, offsets, cur = [], [], 0
    for b in blocks:
        b = jnp.asarray(b, dtype)
        r, c = b.shape
        rp = _pad8(r)
        padded.append(jnp.zeros((rp, width), dtype).at[:r, :c].set(b))
        offsets.append(cur)
        cur += rp
    return jnp.concatenate(padded, axis=0), tuple(offsets)


def prepare_params(params):
    """One-time, off-hot-path re-layout:
      * char embedding folded into the char-LSTM x-projection (+bias),
      * per-direction LSTM weights combined (gate-grouped columns,
        block-diagonal recurrent matrix),
      * all weights + direction masks packed into TWO contiguous f32 slabs."""
    cl, sl = params["char_lstm"], params["shared_lstm"]
    Hc = cl["whh_f"].shape[1]
    H = sl["whh_f"].shape[1]
    DC = params["dm_w2"].shape[0]
    V = params["char_emb"].shape[0]

    c_wx, c_bx, c_whh_bd = _combine_bilstm(cl, Hc)
    s_wx, s_bx, s_whh_bd = _combine_bilstm(sl, H)
    E = s_wx.shape[0] - 2 * Hc

    # Embedding lookup folded into the hoisted x-projection; one-hot rows sum
    # to 1, so the gate bias folds into every vocab row as well.
    c_emb_gates = jnp.dot(params["char_emb"], c_wx) + c_bx       # (V, 8Hc)

    dm_pad = E + 2 * Hc            # lanes reserved for dm logits in out slab
    assert dm_pad >= DC

    def fwd_mask(h):               # 1.0 on fwd-direction gate columns
        return ((np.arange(8 * h) // h) % 2 == 0).astype(np.float32)[None, :]

    half_mask = (np.arange(2 * H) < H).astype(np.float32)[None, :]

    wA_width = max(8 * Hc, 2 * H, dm_pad)
    wA, offs128 = _pack_rows(
        [c_emb_gates, c_whh_bd,
         params["prj_w"].T, params["prj_b"].reshape(1, -1),
         params["dm_w1"].T, params["dm_b1"].reshape(1, -1),
         params["dm_w2"].T, params["dm_b2"].reshape(1, -1),
         fwd_mask(Hc), half_mask],
        width=wA_width)
    wB, offs256 = _pack_rows([s_wx, s_bx, s_whh_bd, fwd_mask(H)],
                             width=8 * H)

    meta = Meta(Vp=_pad8(V), Hc=Hc, E=E, H=H, DC=DC, dm_pad=dm_pad,
                offs128=offs128, offs256=offs256)
    return {"wA": wA, "wB": wB}, meta


# ----------------------------- main -----------------------------------------

if __name__ == "__main__":
    CHAR_VOCAB, CHAR_EMB, CHAR_HID = 20, 16, 16
    EMB, HID = 32, 32
    T, B, WORD_LEN = 8, 2, 6
    DOMAIN_CNT = 3
    NW = T * B

    key = jax.random.PRNGKey(0)
    k_par, k_chr, k_wrd = jax.random.split(key, 3)

    params = init_params(k_par, CHAR_VOCAB, CHAR_EMB, CHAR_HID, EMB, HID,
                         DOMAIN_CNT)
    prep, meta = prepare_params(params)

    char_batch = jax.random.randint(k_chr, (WORD_LEN, NW), 2, CHAR_VOCAB,
                                    dtype=jnp.int32)
    word_ivt_idx = jnp.arange(NW, dtype=jnp.int32)   # identity inverse-sort
    word_out = 0.5 * jax.random.normal(k_wrd, (T, B, EMB), dtype=jnp.float32)

    fwd = jax.jit(shared_model_forward, static_argnums=(1,))
    final_out = fwd(prep, meta, char_batch, word_ivt_idx, word_out)
    for o in final_out:
        jax.block_until_ready(o)

    assert final_out[0].shape == (T, B, EMB + 2 * CHAR_HID)
    assert final_out[1].shape == (T, B, 2 * HID)
    assert final_out[2].shape == (B, 2 * HID)
    assert final_out[3].shape == (B, DOMAIN_CNT)
    for o in final_out:
        assert bool(jnp.all(jnp.isfinite(o)))
    print("KERNEL_OK")
</pallas_src>

<mosaic_0001>
module attributes {stable_mosaic.version = 11 : i64} {
  func.func @kernel(%arg0: memref<112x1xi32, #tpu.memory_space<vmem>>, %arg1: memref<16x32xf32, #tpu.memory_space<vmem>>, %arg2: memref<256x128xf32, #tpu.memory_space<vmem>>, %arg3: memref<144x256xf32, #tpu.memory_space<vmem>>, %arg4: memref<18x128xf32, #tpu.memory_space<vmem>>) attributes {dimension_semantics = [], scalar_prefetch = 0 : i64, scratch_operands = 0 : i64, tpu.core_type = #tpu.core_type<tc>} {
    %c0 = arith.constant 0 : index
    %c0_0 = arith.constant 0 : index
    %0 = vector.load %arg2[%c0, %c0_0] : memref<256x128xf32, #tpu.memory_space<vmem>>, vector<24x128xf32>
    %c24 = arith.constant 24 : index
    %c0_1 = arith.constant 0 : index
    %1 = vector.load %arg2[%c24, %c0_1] : memref<256x128xf32, #tpu.memory_space<vmem>>, vector<32x128xf32>
    %c56 = arith.constant 56 : index
    %c0_2 = arith.constant 0 : index
    %2 = vector.load %arg2[%c56, %c0_2] : memref<256x128xf32, #tpu.memory_space<vmem>>, vector<64x64xf32>
    %c120 = arith.constant 120 : index
    %c0_3 = arith.constant 0 : index
    %3 = vector.load %arg2[%c120, %c0_3] : memref<256x128xf32, #tpu.memory_space<vmem>>, vector<1x64xf32>
    %c128 = arith.constant 128 : index
    %c0_4 = arith.constant 0 : index
    %4 = vector.load %arg2[%c128, %c0_4] : memref<256x128xf32, #tpu.memory_space<vmem>>, vector<64x32xf32>
    %c192 = arith.constant 192 : index
    %c0_5 = arith.constant 0 : index
    %5 = vector.load %arg2[%c192, %c0_5] : memref<256x128xf32, #tpu.memory_space<vmem>>, vector<1x32xf32>
    %c200 = arith.constant 200 : index
    %c0_6 = arith.constant 0 : index
    %6 = vector.load %arg2[%c200, %c0_6] : memref<256x128xf32, #tpu.memory_space<vmem>>, vector<32x64xf32>
    %c232 = arith.constant 232 : index
    %c0_7 = arith.constant 0 : index
    %7 = vector.load %arg2[%c232, %c0_7] : memref<256x128xf32, #tpu.memory_space<vmem>>, vector<1x64xf32>
    %c240 = arith.constant 240 : index
    %c0_8 = arith.constant 0 : index
    %8 = vector.load %arg2[%c240, %c0_8] : memref<256x128xf32, #tpu.memory_space<vmem>>, vector<1x128xf32>
    %cst = arith.constant 5.000000e-01 : f32
    %9 = vector.broadcast %cst : f32 to vector<1x128xf32>
    %10 = arith.cmpf ogt, %8, %9 : vector<1x128xf32>
    %c248 = arith.constant 248 : index
    %c0_9 = arith.constant 0 : index
    %11 = vector.load %arg2[%c248, %c0_9] : memref<256x128xf32, #tpu.memory_space<vmem>>, vector<1x64xf32>
    %cst_10 = arith.constant 5.000000e-01 : f32
    %12 = vector.broadcast %cst_10 : f32 to vector<1x64xf32>
    %13 = arith.cmpf ogt, %11, %12 : vector<1x64xf32>
    %c0_11 = arith.constant 0 : index
    %c0_12 = arith.constant 0 : index
    %14 = vector.load %arg3[%c0_11, %c0_12] : memref<144x256xf32, #tpu.memory_space<vmem>>, vector<64x256xf32>
    %c64 = arith.constant 64 : index
    %c0_13 = arith.constant 0 : index
    %15 = vector.load %arg3[%c64, %c0_13] : memref<144x256xf32, #tpu.memory_space<vmem>>, vector<1x256xf32>
    %c72 = arith.constant 72 : index
    %c0_14 = arith.constant 0 : index
    %16 = vector.load %arg3[%c72, %c0_14] : memref<144x256xf32, #tpu.memory_space<vmem>>, vector<64x256xf32>
    %c136 = arith.constant 136 : index
    %c0_15 = arith.constant 0 : index
    %17 = vector.load %arg3[%c136, %c0_15] : memref<144x256xf32, #tpu.memory_space<vmem>>, vector<1x256xf32>
    %cst_16 = arith.constant 5.000000e-01 : f32
    %18 = vector.broadcast %cst_16 : f32 to vector<1x256xf32>
    %19 = arith.cmpf ogt, %17, %18 : vector<1x256xf32>
    %c0_17 = arith.constant 0 : index
    %c0_18 = arith.constant 0 : index
    %20 = vector.load %arg0[%c0_17, %c0_18] : memref<112x1xi32, #tpu.memory_space<vmem>>, vector<96x1xi32>
    %21 = tpu.iota {dimensions = array<i32: 1>} : vector<96x24xi32>
    %22 = vector.broadcast %20 : vector<96x1xi32> to vector<96x24xi32>
    %23 = arith.cmpi eq, %22, %21 : vector<96x24xi32>
    %24 = arith.extui %23 : vector<96x24xi1> to vector<96x24xi32>
    %25 = arith.sitofp %24 : vector<96x24xi32> to vector<96x24xf32>
    %cst_19 = arith.constant dense<0.000000e+00> : vector<96x128xf32>
    %26 = tpu.matmul %25, %0, %cst_19 {dimension_numbers = #tpu.dot_dimension_numbers<[1], [0], [0], [1], [0, 0, 1, 1], [], []>} : vector<96x24xf32>, vector<24x128xf32>, vector<96x128xf32> -> vector<96x128xf32>
    %cst_20 = arith.constant 0.000000e+00 : f32
    %27 = vector.broadcast %cst_20 : f32 to vector<16x32xf32>
    %cst_21 = arith.constant 0.000000e+00 : f32
    %28 = vector.broadcast %cst_21 : f32 to vector<16x32xf32>
    %29 = vector.extract_strided_slice %26 {offsets = [0, 0], sizes = [16, 128], strides = [1, 1]} : vector<96x128xf32> to vector<16x128xf32>
    %30 = vector.extract_strided_slice %26 {offsets = [80, 0], sizes = [16, 128], strides = [1, 1]} : vector<96x128xf32> to vector<16x128xf32>
    %31 = vector.shape_cast %10 : vector<1x128xi1> to vector<1x128xi1>
    %32 = vector.broadcast %31 : vector<1x128xi1> to vector<16x128xi1>
    %33 = arith.select %32, %29, %30 : vector<16x128xi1>, vector<16x128xf32>
    %cst_22 = arith.constant dense<0.000000e+00> : vector<16x128xf32>
    %34 = tpu.matmul %27, %1, %cst_22 {dimension_numbers = #tpu.dot_dimension_numbers<[1], [0], [0], [1], [0, 0, 1, 1], [], []>} : vector<16x32xf32>, vector<32x128xf32>, vector<16x128xf32> -> vector<16x128xf32>
    %35 = arith.addf %33, %34 : vector<16x128xf32>
    %36 = vector.extract_strided_slice %35 {offsets = [0, 0], sizes = [16, 96], strides = [1, 1]} : vector<16x128xf32> to vector<16x96xf32>
    %37 = arith.negf %36 : vector<16x96xf32>
    %38 = math.exp %37 : vector<16x96xf32>
    %cst_23 = arith.constant 1.000000e+00 : f32
    %39 = vector.broadcast %cst_23 : f32 to vector<16x96xf32>
    %40 = arith.addf %39, %38 : vector<16x96xf32>
    %41 = arith.divf %39, %40 : vector<16x96xf32>
    %42 = vector.extract_strided_slice %35 {offsets = [0, 96], sizes = [16, 32], strides = [1, 1]} : vector<16x128xf32> to vector<16x32xf32>
    %43 = math.tanh %42 : vector<16x32xf32>
    %44 = vector.extract_strided_slice %41 {offsets = [0, 0], sizes = [16, 32], strides = [1, 1]} : vector<16x96xf32> to vector<16x32xf32>
    %45 = vector.extract_strided_slice %41 {offsets = [0, 32], sizes = [16, 32], strides = [1, 1]} : vector<16x96xf32> to vector<16x32xf32>
    %46 = vector.extract_strided_slice %41 {offsets = [0, 64], sizes = [16, 32], strides = [1, 1]} : vector<16x96xf32> to vector<16x32xf32>
    %47 = arith.mulf %45, %28 : vector<16x32xf32>
    %48 = arith.mulf %44, %43 : vector<16x32xf32>
    %49 = arith.addf %47, %48 : vector<16x32xf32>
    %50 = math.tanh %49 : vector<16x32xf32>
    %51 = arith.mulf %46, %50 : vector<16x32xf32>
    %52 = vector.extract_strided_slice %26 {offsets = [16, 0], sizes = [16, 128], strides = [1, 1]} : vector<96x128xf32> to vector<16x128xf32>
    %53 = vector.extract_strided_slice %26 {offsets = [64, 0], sizes = [16, 128], strides = [1, 1]} : vector<96x128xf32> to vector<16x128xf32>
    %54 = vector.shape_cast %10 : vector<1x128xi1> to vector<1x128xi1>
    %55 = vector.broadcast %54 : vector<1x128xi1> to vector<16x128xi1>
    %56 = arith.select %55, %52, %53 : vector<16x128xi1>, vector<16x128xf32>
    %cst_24 = arith.constant dense<0.000000e+00> : vector<16x128xf32>
    %57 = tpu.matmul %51, %1, %cst_24 {dimension_numbers = #tpu.dot_dimension_numbers<[1], [0], [0], [1], [0, 0, 1, 1], [], []>} : vector<16x32xf32>, vector<32x128xf32>, vector<16x128xf32> -> vector<16x128xf32>
    %58 = arith.addf %56, %57 : vector<16x128xf32>
    %59 = vector.extract_strided_slice %58 {offsets = [0, 0], sizes = [16, 96], strides = [1, 1]} : vector<16x128xf32> to vector<16x96xf32>
    %60 = arith.negf %59 : vector<16x96xf32>
    %61 = math.exp %60 : vector<16x96xf32>
    %cst_25 = arith.constant 1.000000e+00 : f32
    %62 = vector.broadcast %cst_25 : f32 to vector<16x96xf32>
    %63 = arith.addf %62, %61 : vector<16x96xf32>
    %64 = arith.divf %62, %63 : vector<16x96xf32>
    %65 = vector.extract_strided_slice %58 {offsets = [0, 96], sizes = [16, 32], strides = [1, 1]} : vector<16x128xf32> to vector<16x32xf32>
    %66 = math.tanh %65 : vector<16x32xf32>
    %67 = vector.extract_strided_slice %64 {offsets = [0, 0], sizes = [16, 32], strides = [1, 1]} : vector<16x96xf32> to vector<16x32xf32>
    %68 = vector.extract_strided_slice %64 {offsets = [0, 32], sizes = [16, 32], strides = [1, 1]} : vector<16x96xf32> to vector<16x32xf32>
    %69 = vector.extract_strided_slice %64 {offsets = [0, 64], sizes = [16, 32], strides = [1, 1]} : vector<16x96xf32> to vector<16x32xf32>
    %70 = arith.mulf %68, %49 : vector<16x32xf32>
    %71 = arith.mulf %67, %66 : vector<16x32xf32>
    %72 = arith.addf %70, %71 : vector<16x32xf32>
    %73 = math.tanh %72 : vector<16x32xf32>
    %74 = arith.mulf %69, %73 : vector<16x32xf32>
    %75 = vector.extract_strided_slice %26 {offsets = [32, 0], sizes = [16, 128], strides = [1, 1]} : vector<96x128xf32> to vector<16x128xf32>
    %76 = vector.extract_strided_slice %26 {offsets = [48, 0], sizes = [16, 128], strides = [1, 1]} : vector<96x128xf32> to vector<16x128xf32>
    %77 = vector.shape_cast %10 : vector<1x128xi1> to vector<1x128xi1>
    %78 = vector.broadcast %77 : vector<1x128xi1> to vector<16x128xi1>
    %79 = arith.select %78, %75, %76 : vector<16x128xi1>, vector<16x128xf32>
    %cst_26 = arith.constant dense<0.000000e+00> : vector<16x128xf32>
    %80 = tpu.matmul %74, %1, %cst_26 {dimension_numbers = #tpu.dot_dimension_numbers<[1], [0], [0], [1], [0, 0, 1, 1], [], []>} : vector<16x32xf32>, vector<32x128xf32>, vector<16x128xf32> -> vector<16x128xf32>
    %81 = arith.addf %79, %80 : vector<16x128xf32>
    %82 = vector.extract_strided_slice %81 {offsets = [0, 0], sizes = [16, 96], strides = [1, 1]} : vector<16x128xf32> to vector<16x96xf32>
    %83 = arith.negf %82 : vector<16x96xf32>
    %84 = math.exp %83 : vector<16x96xf32>
    %cst_27 = arith.constant 1.000000e+00 : f32
    %85 = vector.broadcast %cst_27 : f32 to vector<16x96xf32>
    %86 = arith.addf %85, %84 : vector<16x96xf32>
    %87 = arith.divf %85, %86 : vector<16x96xf32>
    %88 = vector.extract_strided_slice %81 {offsets = [0, 96], sizes = [16, 32], strides = [1, 1]} : vector<16x128xf32> to vector<16x32xf32>
    %89 = math.tanh %88 : vector<16x32xf32>
    %90 = vector.extract_strided_slice %87 {offsets = [0, 0], sizes = [16, 32], strides = [1, 1]} : vector<16x96xf32> to vector<16x32xf32>
    %91 = vector.extract_strided_slice %87 {offsets = [0, 32], sizes = [16, 32], strides = [1, 1]} : vector<16x96xf32> to vector<16x32xf32>
    %92 = vector.extract_strided_slice %87 {offsets = [0, 64], sizes = [16, 32], strides = [1, 1]} : vector<16x96xf32> to vector<16x32xf32>
    %93 = arith.mulf %91, %72 : vector<16x32xf32>
    %94 = arith.mulf %90, %89 : vector<16x32xf32>
    %95 = arith.addf %93, %94 : vector<16x32xf32>
    %96 = math.tanh %95 : vector<16x32xf32>
    %97 = arith.mulf %92, %96 : vector<16x32xf32>
    %98 = vector.extract_strided_slice %26 {offsets = [48, 0], sizes = [16, 128], strides = [1, 1]} : vector<96x128xf32> to vector<16x128xf32>
    %99 = vector.extract_strided_slice %26 {offsets = [32, 0], sizes = [16, 128], strides = [1, 1]} : vector<96x128xf32> to vector<16x128xf32>
    %100 = vector.shape_cast %10 : vector<1x128xi1> to vector<1x128xi1>
    %101 = vector.broadcast %100 : vector<1x128xi1> to vector<16x128xi1>
    %102 = arith.select %101, %98, %99 : vector<16x128xi1>, vector<16x128xf32>
    %cst_28 = arith.constant dense<0.000000e+00> : vector<16x128xf32>
    %103 = tpu.matmul %97, %1, %cst_28 {dimension_numbers = #tpu.dot_dimension_numbers<[1], [0], [0], [1], [0, 0, 1, 1], [], []>} : vector<16x32xf32>, vector<32x128xf32>, vector<16x128xf32> -> vector<16x128xf32>
    %104 = arith.addf %102, %103 : vector<16x128xf32>
    %105 = vector.extract_strided_slice %104 {offsets = [0, 0], sizes = [16, 96], strides = [1, 1]} : vector<16x128xf32> to vector<16x96xf32>
    %106 = arith.negf %105 : vector<16x96xf32>
    %107 = math.exp %106 : vector<16x96xf32>
    %cst_29 = arith.constant 1.000000e+00 : f32
    %108 = vector.broadcast %cst_29 : f32 to vector<16x96xf32>
    %109 = arith.addf %108, %107 : vector<16x96xf32>
    %110 = arith.divf %108, %109 : vector<16x96xf32>
    %111 = vector.extract_strided_slice %104 {offsets = [0, 96], sizes = [16, 32], strides = [1, 1]} : vector<16x128xf32> to vector<16x32xf32>
    %112 = math.tanh %111 : vector<16x32xf32>
    %113 = vector.extract_strided_slice %110 {offsets = [0, 0], sizes = [16, 32], strides = [1, 1]} : vector<16x96xf32> to vector<16x32xf32>
    %114 = vector.extract_strided_slice %110 {offsets = [0, 32], sizes = [16, 32], strides = [1, 1]} : vector<16x96xf32> to vector<16x32xf32>
    %115 = vector.extract_strided_slice %110 {offsets = [0, 64], sizes = [16, 32], strides = [1, 1]} : vector<16x96xf32> to vector<16x32xf32>
    %116 = arith.mulf %114, %95 : vector<16x32xf32>
    %117 = arith.mulf %113, %112 : vector<16x32xf32>
    %118 = arith.addf %116, %117 : vector<16x32xf32>
    %119 = math.tanh %118 : vector<16x32xf32>
    %120 = arith.mulf %115, %119 : vector<16x32xf32>
    %121 = vector.extract_strided_slice %26 {offsets = [64, 0], sizes = [16, 128], strides = [1, 1]} : vector<96x128xf32> to vector<16x128xf32>
    %122 = vector.extract_strided_slice %26 {offsets = [16, 0], sizes = [16, 128], strides = [1, 1]} : vector<96x128xf32> to vector<16x128xf32>
    %123 = vector.shape_cast %10 : vector<1x128xi1> to vector<1x128xi1>
    %124 = vector.broadcast %123 : vector<1x128xi1> to vector<16x128xi1>
    %125 = arith.select %124, %121, %122 : vector<16x128xi1>, vector<16x128xf32>
    %cst_30 = arith.constant dense<0.000000e+00> : vector<16x128xf32>
    %126 = tpu.matmul %120, %1, %cst_30 {dimension_numbers = #tpu.dot_dimension_numbers<[1], [0], [0], [1], [0, 0, 1, 1], [], []>} : vector<16x32xf32>, vector<32x128xf32>, vector<16x128xf32> -> vector<16x128xf32>
    %127 = arith.addf %125, %126 : vector<16x128xf32>
    %128 = vector.extract_strided_slice %127 {offsets = [0, 0], sizes = [16, 96], strides = [1, 1]} : vector<16x128xf32> to vector<16x96xf32>
    %129 = arith.negf %128 : vector<16x96xf32>
    %130 = math.exp %129 : vector<16x96xf32>
    %cst_31 = arith.constant 1.000000e+00 : f32
    %131 = vector.broadcast %cst_31 : f32 to vector<16x96xf32>
    %132 = arith.addf %131, %130 : vector<16x96xf32>
    %133 = arith.divf %131, %132 : vector<16x96xf32>
    %134 = vector.extract_strided_slice %127 {offsets = [0, 96], sizes = [16, 32], strides = [1, 1]} : vector<16x128xf32> to vector<16x32xf32>
    %135 = math.tanh %134 : vector<16x32xf32>
    %136 = vector.extract_strided_slice %133 {offsets = [0, 0], sizes = [16, 32], strides = [1, 1]} : vector<16x96xf32> to vector<16x32xf32>
    %137 = vector.extract_strided_slice %133 {offsets = [0, 32], sizes = [16, 32], strides = [1, 1]} : vector<16x96xf32> to vector<16x32xf32>
    %138 = vector.extract_strided_slice %133 {offsets = [0, 64], sizes = [16, 32], strides = [1, 1]} : vector<16x96xf32> to vector<16x32xf32>
    %139 = arith.mulf %137, %118 : vector<16x32xf32>
    %140 = arith.mulf %136, %135 : vector<16x32xf32>
    %141 = arith.addf %139, %140 : vector<16x32xf32>
    %142 = math.tanh %141 : vector<16x32xf32>
    %143 = arith.mulf %138, %142 : vector<16x32xf32>
    %144 = vector.extract_strided_slice %26 {offsets = [80, 0], sizes = [16, 128], strides = [1, 1]} : vector<96x128xf32> to vector<16x128xf32>
    %145 = vector.extract_strided_slice %26 {offsets = [0, 0], sizes = [16, 128], strides = [1, 1]} : vector<96x128xf32> to vector<16x128xf32>
    %146 = vector.shape_cast %10 : vector<1x128xi1> to vector<1x128xi1>
    %147 = vector.broadcast %146 : vector<1x128xi1> to vector<16x128xi1>
    %148 = arith.select %147, %144, %145 : vector<16x128xi1>, vector<16x128xf32>
    %cst_32 = arith.constant dense<0.000000e+00> : vector<16x128xf32>
    %149 = tpu.matmul %143, %1, %cst_32 {dimension_numbers = #tpu.dot_dimension_numbers<[1], [0], [0], [1], [0, 0, 1, 1], [], []>} : vector<16x32xf32>, vector<32x128xf32>, vector<16x128xf32> -> vector<16x128xf32>
    %150 = arith.addf %148, %149 : vector<16x128xf32>
    %151 = vector.extract_strided_slice %150 {offsets = [0, 0], sizes = [16, 96], strides = [1, 1]} : vector<16x128xf32> to vector<16x96xf32>
    %152 = arith.negf %151 : vector<16x96xf32>
    %153 = math.exp %152 : vector<16x96xf32>
    %cst_33 = arith.constant 1.000000e+00 : f32
    %154 = vector.broadcast %cst_33 : f32 to vector<16x96xf32>
    %155 = arith.addf %154, %153 : vector<16x96xf32>
    %156 = arith.divf %154, %155 : vector<16x96xf32>
    %157 = vector.extract_strided_slice %150 {offsets = [0, 96], sizes = [16, 32], strides = [1, 1]} : vector<16x128xf32> to vector<16x32xf32>
    %158 = math.tanh %157 : vector<16x32xf32>
    %159 = vector.extract_strided_slice %156 {offsets = [0, 0], sizes = [16, 32], strides = [1, 1]} : vector<16x96xf32> to vector<16x32xf32>
    %160 = vector.extract_strided_slice %156 {offsets = [0, 32], sizes = [16, 32], strides = [1, 1]} : vector<16x96xf32> to vector<16x32xf32>
    %161 = vector.extract_strided_slice %156 {offsets = [0, 64], sizes = [16, 32], strides = [1, 1]} : vector<16x96xf32> to vector<16x32xf32>
    %162 = arith.mulf %160, %141 : vector<16x32xf32>
    %163 = arith.mulf %159, %158 : vector<16x32xf32>
    %164 = arith.addf %162, %163 : vector<16x32xf32>
    %165 = math.tanh %164 : vector<16x32xf32>
    %166 = arith.mulf %161, %165 : vector<16x32xf32>
    %c96 = arith.constant 96 : index
    %c0_34 = arith.constant 0 : index
    %167 = vector.load %arg0[%c96, %c0_34] : memref<112x1xi32, #tpu.memory_space<vmem>>, vector<16x1xi32>
    %168 = tpu.iota {dimensions = array<i32: 1>} : vector<16x16xi32>
    %169 = vector.broadcast %167 : vector<16x1xi32> to vector<16x16xi32>
    %170 = arith.cmpi eq, %169, %168 : vector<16x16xi32>
    %171 = arith.extui %170 : vector<16x16xi1> to vector<16x16xi32>
    %172 = arith.sitofp %171 : vector<16x16xi32> to vector<16x16xf32>
    %cst_35 = arith.constant dense<0.000000e+00> : vector<16x32xf32>
    %173 = tpu.matmul %172, %166, %cst_35 {dimension_numbers = #tpu.dot_dimension_numbers<[1], [0], [0], [1], [0, 0, 1, 1], [], []>} : vector<16x16xf32>, vector<16x32xf32>, vector<16x32xf32> -> vector<16x32xf32>
    %c0_36 = arith.constant 0 : index
    %c0_37 = arith.constant 0 : index
    %174 = vector.load %arg1[%c0_36, %c0_37] : memref<16x32xf32, #tpu.memory_space<vmem>>, vector<16x32xf32>
    %175 = tpu.concatenate %174, %173 in 1 : vector<16x32xf32>, vector<16x32xf32> -> vector<16x64xf32>
    %cst_38 = arith.constant dense<0.000000e+00> : vector<16x256xf32>
    %176 = tpu.matmul %175, %14, %cst_38 {dimension_numbers = #tpu.dot_dimension_numbers<[1], [0], [0], [1], [0, 0, 1, 1], [], []>} : vector<16x64xf32>, vector<64x256xf32>, vector<16x256xf32> -> vector<16x256xf32>
    %177 = vector.broadcast %15 : vector<1x256xf32> to vector<16x256xf32>
    %178 = arith.addf %176, %177 : vector<16x256xf32>
    %cst_39 = arith.constant 0.000000e+00 : f32
    %179 = vector.broadcast %cst_39 : f32 to vector<2x64xf32>
    %cst_40 = arith.constant 0.000000e+00 : f32
    %180 = vector.broadcast %cst_40 : f32 to vector<2x64xf32>
    %cst_41 = arith.constant 0.000000e+00 : f32
    %181 = vector.broadcast %cst_41 : f32 to vector<2x64xf32>
    %182 = vector.extract_strided_slice %178 {offsets = [0, 0], sizes = [2, 256], strides = [1, 1]} : vector<16x256xf32> to vector<2x256xf32>
    %183 = vector.extract_strided_slice %178 {offsets = [14, 0], sizes = [2, 256], strides = [1, 1]} : vector<16x256xf32> to vector<2x256xf32>
    %184 = vector.shape_cast %19 : vector<1x256xi1> to vector<1x256xi1>
    %185 = vector.broadcast %184 : vector<1x256xi1> to vector<2x256xi1>
    %186 = arith.select %185, %182, %183 : vector<2x256xi1>, vector<2x256xf32>
    %cst_42 = arith.constant dense<0.000000e+00> : vector<2x256xf32>
    %187 = tpu.matmul %179, %16, %cst_42 {dimension_numbers = #tpu.dot_dimension_numbers<[1], [0], [0], [1], [0, 0, 1, 1], [], []>} : vector<2x64xf32>, vector<64x256xf32>, vector<2x256xf32> -> vector<2x256xf32>
    %188 = arith.addf %186, %187 : vector<2x256xf32>
    %189 = vector.extract_strided_slice %188 {offsets = [0, 0], sizes = [2, 192], strides = [1, 1]} : vector<2x256xf32> to vector<2x192xf32>
    %190 = arith.negf %189 : vector<2x192xf32>
    %191 = math.exp %190 : vector<2x192xf32>
    %cst_43 = arith.constant 1.000000e+00 : f32
    %192 = vector.broadcast %cst_43 : f32 to vector<2x192xf32>
    %193 = arith.addf %192, %191 : vector<2x192xf32>
    %194 = arith.divf %192, %193 : vector<2x192xf32>
    %195 = vector.extract_strided_slice %188 {offsets = [0, 192], sizes = [2, 64], strides = [1, 1]} : vector<2x256xf32> to vector<2x64xf32>
    %196 = math.tanh %195 : vector<2x64xf32>
    %197 = vector.extract_strided_slice %194 {offsets = [0, 0], sizes = [2, 64], strides = [1, 1]} : vector<2x192xf32> to vector<2x64xf32>
    %198 = vector.extract_strided_slice %194 {offsets = [0, 64], sizes = [2, 64], strides = [1, 1]} : vector<2x192xf32> to vector<2x64xf32>
    %199 = vector.extract_strided_slice %194 {offsets = [0, 128], sizes = [2, 64], strides = [1, 1]} : vector<2x192xf32> to vector<2x64xf32>
    %200 = arith.mulf %198, %180 : vector<2x64xf32>
    %201 = arith.mulf %197, %196 : vector<2x64xf32>
    %202 = arith.addf %200, %201 : vector<2x64xf32>
    %203 = math.tanh %202 : vector<2x64xf32>
    %204 = arith.mulf %199, %203 : vector<2x64xf32>
    %205 = arith.addf %181, %204 : vector<2x64xf32>
    %206 = vector.extract_strided_slice %178 {offsets = [2, 0], sizes = [2, 256], strides = [1, 1]} : vector<16x256xf32> to vector<2x256xf32>
    %207 = vector.extract_strided_slice %178 {offsets = [12, 0], sizes = [2, 256], strides = [1, 1]} : vector<16x256xf32> to vector<2x256xf32>
    %208 = vector.shape_cast %19 : vector<1x256xi1> to vector<1x256xi1>
    %209 = vector.broadcast %208 : vector<1x256xi1> to vector<2x256xi1>
    %210 = arith.select %209, %206, %207 : vector<2x256xi1>, vector<2x256xf32>
    %cst_44 = arith.constant dense<0.000000e+00> : vector<2x256xf32>
    %211 = tpu.matmul %204, %16, %cst_44 {dimension_numbers = #tpu.dot_dimension_numbers<[1], [0], [0], [1], [0, 0, 1, 1], [], []>} : vector<2x64xf32>, vector<64x256xf32>, vector<2x256xf32> -> vector<2x256xf32>
    %212 = arith.addf %210, %211 : vector<2x256xf32>
    %213 = vector.extract_strided_slice %212 {offsets = [0, 0], sizes = [2, 192], strides = [1, 1]} : vector<2x256xf32> to vector<2x192xf32>
    %214 = arith.negf %213 : vector<2x192xf32>
    %215 = math.exp %214 : vector<2x192xf32>
    %cst_45 = arith.constant 1.000000e+00 : f32
    %216 = vector.broadcast %cst_45 : f32 to vector<2x192xf32>
    %217 = arith.addf %216, %215 : vector<2x192xf32>
    %218 = arith.divf %216, %217 : vector<2x192xf32>
    %219 = vector.extract_strided_slice %212 {offsets = [0, 192], sizes = [2, 64], strides = [1, 1]} : vector<2x256xf32> to vector<2x64xf32>
    %220 = math.tanh %219 : vector<2x64xf32>
    %221 = vector.extract_strided_slice %218 {offsets = [0, 0], sizes = [2, 64], strides = [1, 1]} : vector<2x192xf32> to vector<2x64xf32>
    %222 = vector.extract_strided_slice %218 {offsets = [0, 64], sizes = [2, 64], strides = [1, 1]} : vector<2x192xf32> to vector<2x64xf32>
    %223 = vector.extract_strided_slice %218 {offsets = [0, 128], sizes = [2, 64], strides = [1, 1]} : vector<2x192xf32> to vector<2x64xf32>
    %224 = arith.mulf %222, %202 : vector<2x64xf32>
    %225 = arith.mulf %221, %220 : vector<2x64xf32>
    %226 = arith.addf %224, %225 : vector<2x64xf32>
    %227 = math.tanh %226 : vector<2x64xf32>
    %228 = arith.mulf %223, %227 : vector<2x64xf32>
    %229 = arith.addf %205, %228 : vector<2x64xf32>
    %230 = vector.extract_strided_slice %178 {offsets = [4, 0], sizes = [2, 256], strides = [1, 1]} : vector<16x256xf32> to vector<2x256xf32>
    %231 = vector.extract_strided_slice %178 {offsets = [10, 0], sizes = [2, 256], strides = [1, 1]} : vector<16x256xf32> to vector<2x256xf32>
    %232 = vector.shape_cast %19 : vector<1x256xi1> to vector<1x256xi1>
    %233 = vector.broadcast %232 : vector<1x256xi1> to vector<2x256xi1>
    %234 = arith.select %233, %230, %231 : vector<2x256xi1>, vector<2x256xf32>
    %cst_46 = arith.constant dense<0.000000e+00> : vector<2x256xf32>
    %235 = tpu.matmul %228, %16, %cst_46 {dimension_numbers = #tpu.dot_dimension_numbers<[1], [0], [0], [1], [0, 0, 1, 1], [], []>} : vector<2x64xf32>, vector<64x256xf32>, vector<2x256xf32> -> vector<2x256xf32>
    %236 = arith.addf %234, %235 : vector<2x256xf32>
    %237 = vector.extract_strided_slice %236 {offsets = [0, 0], sizes = [2, 192], strides = [1, 1]} : vector<2x256xf32> to vector<2x192xf32>
    %238 = arith.negf %237 : vector<2x192xf32>
    %239 = math.exp %238 : vector<2x192xf32>
    %cst_47 = arith.constant 1.000000e+00 : f32
    %240 = vector.broadcast %cst_47 : f32 to vector<2x192xf32>
    %241 = arith.addf %240, %239 : vector<2x192xf32>
    %242 = arith.divf %240, %241 : vector<2x192xf32>
    %243 = vector.extract_strided_slice %236 {offsets = [0, 192], sizes = [2, 64], strides = [1, 1]} : vector<2x256xf32> to vector<2x64xf32>
    %244 = math.tanh %243 : vector<2x64xf32>
    %245 = vector.extract_strided_slice %242 {offsets = [0, 0], sizes = [2, 64], strides = [1, 1]} : vector<2x192xf32> to vector<2x64xf32>
    %246 = vector.extract_strided_slice %242 {offsets = [0, 64], sizes = [2, 64], strides = [1, 1]} : vector<2x192xf32> to vector<2x64xf32>
    %247 = vector.extract_strided_slice %242 {offsets = [0, 128], sizes = [2, 64], strides = [1, 1]} : vector<2x192xf32> to vector<2x64xf32>
    %248 = arith.mulf %246, %226 : vector<2x64xf32>
    %249 = arith.mulf %245, %244 : vector<2x64xf32>
    %250 = arith.addf %248, %249 : vector<2x64xf32>
    %251 = math.tanh %250 : vector<2x64xf32>
    %252 = arith.mulf %247, %251 : vector<2x64xf32>
    %253 = arith.addf %229, %252 : vector<2x64xf32>
    %254 = vector.extract_strided_slice %178 {offsets = [6, 0], sizes = [2, 256], strides = [1, 1]} : vector<16x256xf32> to vector<2x256xf32>
    %255 = vector.extract_strided_slice %178 {offsets = [8, 0], sizes = [2, 256], strides = [1, 1]} : vector<16x256xf32> to vector<2x256xf32>
    %256 = vector.shape_cast %19 : vector<1x256xi1> to vector<1x256xi1>
    %257 = vector.broadcast %256 : vector<1x256xi1> to vector<2x256xi1>
    %258 = arith.select %257, %254, %255 : vector<2x256xi1>, vector<2x256xf32>
    %cst_48 = arith.constant dense<0.000000e+00> : vector<2x256xf32>
    %259 = tpu.matmul %252, %16, %cst_48 {dimension_numbers = #tpu.dot_dimension_numbers<[1], [0], [0], [1], [0, 0, 1, 1], [], []>} : vector<2x64xf32>, vector<64x256xf32>, vector<2x256xf32> -> vector<2x256xf32>
    %260 = arith.addf %258, %259 : vector<2x256xf32>
    %261 = vector.extract_strided_slice %260 {offsets = [0, 0], sizes = [2, 192], strides = [1, 1]} : vector<2x256xf32> to vector<2x192xf32>
    %262 = arith.negf %261 : vector<2x192xf32>
    %263 = math.exp %262 : vector<2x192xf32>
    %cst_49 = arith.constant 1.000000e+00 : f32
    %264 = vector.broadcast %cst_49 : f32 to vector<2x192xf32>
    %265 = arith.addf %264, %263 : vector<2x192xf32>
    %266 = arith.divf %264, %265 : vector<2x192xf32>
    %267 = vector.extract_strided_slice %260 {offsets = [0, 192], sizes = [2, 64], strides = [1, 1]} : vector<2x256xf32> to vector<2x64xf32>
    %268 = math.tanh %267 : vector<2x64xf32>
    %269 = vector.extract_strided_slice %266 {offsets = [0, 0], sizes = [2, 64], strides = [1, 1]} : vector<2x192xf32> to vector<2x64xf32>
    %270 = vector.extract_strided_slice %266 {offsets = [0, 64], sizes = [2, 64], strides = [1, 1]} : vector<2x192xf32> to vector<2x64xf32>
    %271 = vector.extract_strided_slice %266 {offsets = [0, 128], sizes = [2, 64], strides = [1, 1]} : vector<2x192xf32> to vector<2x64xf32>
    %272 = arith.mulf %270, %250 : vector<2x64xf32>
    %273 = arith.mulf %269, %268 : vector<2x64xf32>
    %274 = arith.addf %272, %273 : vector<2x64xf32>
    %275 = math.tanh %274 : vector<2x64xf32>
    %276 = arith.mulf %271, %275 : vector<2x64xf32>
    %277 = arith.addf %253, %276 : vector<2x64xf32>
    %278 = vector.extract_strided_slice %178 {offsets = [8, 0], sizes = [2, 256], strides = [1, 1]} : vector<16x256xf32> to vector<2x256xf32>
    %279 = vector.extract_strided_slice %178 {offsets = [6, 0], sizes = [2, 256], strides = [1, 1]} : vector<16x256xf32> to vector<2x256xf32>
    %280 = vector.shape_cast %19 : vector<1x256xi1> to vector<1x256xi1>
    %281 = vector.broadcast %280 : vector<1x256xi1> to vector<2x256xi1>
    %282 = arith.select %281, %278, %279 : vector<2x256xi1>, vector<2x256xf32>
    %cst_50 = arith.constant dense<0.000000e+00> : vector<2x256xf32>
    %283 = tpu.matmul %276, %16, %cst_50 {dimension_numbers = #tpu.dot_dimension_numbers<[1], [0], [0], [1], [0, 0, 1, 1], [], []>} : vector<2x64xf32>, vector<64x256xf32>, vector<2x256xf32> -> vector<2x256xf32>
    %284 = arith.addf %282, %283 : vector<2x256xf32>
    %285 = vector.extract_strided_slice %284 {offsets = [0, 0], sizes = [2, 192], strides = [1, 1]} : vector<2x256xf32> to vector<2x192xf32>
    %286 = arith.negf %285 : vector<2x192xf32>
    %287 = math.exp %286 : vector<2x192xf32>
    %cst_51 = arith.constant 1.000000e+00 : f32
    %288 = vector.broadcast %cst_51 : f32 to vector<2x192xf32>
    %289 = arith.addf %288, %287 : vector<2x192xf32>
    %290 = arith.divf %288, %289 : vector<2x192xf32>
    %291 = vector.extract_strided_slice %284 {offsets = [0, 192], sizes = [2, 64], strides = [1, 1]} : vector<2x256xf32> to vector<2x64xf32>
    %292 = math.tanh %291 : vector<2x64xf32>
    %293 = vector.extract_strided_slice %290 {offsets = [0, 0], sizes = [2, 64], strides = [1, 1]} : vector<2x192xf32> to vector<2x64xf32>
    %294 = vector.extract_strided_slice %290 {offsets = [0, 64], sizes = [2, 64], strides = [1, 1]} : vector<2x192xf32> to vector<2x64xf32>
    %295 = vector.extract_strided_slice %290 {offsets = [0, 128], sizes = [2, 64], strides = [1, 1]} : vector<2x192xf32> to vector<2x64xf32>
    %296 = arith.mulf %294, %274 : vector<2x64xf32>
    %297 = arith.mulf %293, %292 : vector<2x64xf32>
    %298 = arith.addf %296, %297 : vector<2x64xf32>
    %299 = math.tanh %298 : vector<2x64xf32>
    %300 = arith.mulf %295, %299 : vector<2x64xf32>
    %301 = arith.addf %277, %300 : vector<2x64xf32>
    %302 = vector.extract_strided_slice %178 {offsets = [10, 0], sizes = [2, 256], strides = [1, 1]} : vector<16x256xf32> to vector<2x256xf32>
    %303 = vector.extract_strided_slice %178 {offsets = [4, 0], sizes = [2, 256], strides = [1, 1]} : vector<16x256xf32> to vector<2x256xf32>
    %304 = vector.shape_cast %19 : vector<1x256xi1> to vector<1x256xi1>
    %305 = vector.broadcast %304 : vector<1x256xi1> to vector<2x256xi1>
    %306 = arith.select %305, %302, %303 : vector<2x256xi1>, vector<2x256xf32>
    %cst_52 = arith.constant dense<0.000000e+00> : vector<2x256xf32>
    %307 = tpu.matmul %300, %16, %cst_52 {dimension_numbers = #tpu.dot_dimension_numbers<[1], [0], [0], [1], [0, 0, 1, 1], [], []>} : vector<2x64xf32>, vector<64x256xf32>, vector<2x256xf32> -> vector<2x256xf32>
    %308 = arith.addf %306, %307 : vector<2x256xf32>
    %309 = vector.extract_strided_slice %308 {offsets = [0, 0], sizes = [2, 192], strides = [1, 1]} : vector<2x256xf32> to vector<2x192xf32>
    %310 = arith.negf %309 : vector<2x192xf32>
    %311 = math.exp %310 : vector<2x192xf32>
    %cst_53 = arith.constant 1.000000e+00 : f32
    %312 = vector.broadcast %cst_53 : f32 to vector<2x192xf32>
    %313 = arith.addf %312, %311 : vector<2x192xf32>
    %314 = arith.divf %312, %313 : vector<2x192xf32>
    %315 = vector.extract_strided_slice %308 {offsets = [0, 192], sizes = [2, 64], strides = [1, 1]} : vector<2x256xf32> to vector<2x64xf32>
    %316 = math.tanh %315 : vector<2x64xf32>
    %317 = vector.extract_strided_slice %314 {offsets = [0, 0], sizes = [2, 64], strides = [1, 1]} : vector<2x192xf32> to vector<2x64xf32>
    %318 = vector.extract_strided_slice %314 {offsets = [0, 64], sizes = [2, 64], strides = [1, 1]} : vector<2x192xf32> to vector<2x64xf32>
    %319 = vector.extract_strided_slice %314 {offsets = [0, 128], sizes = [2, 64], strides = [1, 1]} : vector<2x192xf32> to vector<2x64xf32>
    %320 = arith.mulf %318, %298 : vector<2x64xf32>
    %321 = arith.mulf %317, %316 : vector<2x64xf32>
    %322 = arith.addf %320, %321 : vector<2x64xf32>
    %323 = math.tanh %322 : vector<2x64xf32>
    %324 = arith.mulf %319, %323 : vector<2x64xf32>
    %325 = arith.addf %301, %324 : vector<2x64xf32>
    %326 = vector.extract_strided_slice %178 {offsets = [12, 0], sizes = [2, 256], strides = [1, 1]} : vector<16x256xf32> to vector<2x256xf32>
    %327 = vector.extract_strided_slice %178 {offsets = [2, 0], sizes = [2, 256], strides = [1, 1]} : vector<16x256xf32> to vector<2x256xf32>
    %328 = vector.shape_cast %19 : vector<1x256xi1> to vector<1x256xi1>
    %329 = vector.broadcast %328 : vector<1x256xi1> to vector<2x256xi1>
    %330 = arith.select %329, %326, %327 : vector<2x256xi1>, vector<2x256xf32>
    %cst_54 = arith.constant dense<0.000000e+00> : vector<2x256xf32>
    %331 = tpu.matmul %324, %16, %cst_54 {dimension_numbers = #tpu.dot_dimension_numbers<[1], [0], [0], [1], [0, 0, 1, 1], [], []>} : vector<2x64xf32>, vector<64x256xf32>, vector<2x256xf32> -> vector<2x256xf32>
    %332 = arith.addf %330, %331 : vector<2x256xf32>
    %333 = vector.extract_strided_slice %332 {offsets = [0, 0], sizes = [2, 192], strides = [1, 1]} : vector<2x256xf32> to vector<2x192xf32>
    %334 = arith.negf %333 : vector<2x192xf32>
    %335 = math.exp %334 : vector<2x192xf32>
    %cst_55 = arith.constant 1.000000e+00 : f32
    %336 = vector.broadcast %cst_55 : f32 to vector<2x192xf32>
    %337 = arith.addf %336, %335 : vector<2x192xf32>
    %338 = arith.divf %336, %337 : vector<2x192xf32>
    %339 = vector.extract_strided_slice %332 {offsets = [0, 192], sizes = [2, 64], strides = [1, 1]} : vector<2x256xf32> to vector<2x64xf32>
    %340 = math.tanh %339 : vector<2x64xf32>
    %341 = vector.extract_strided_slice %338 {offsets = [0, 0], sizes = [2, 64], strides = [1, 1]} : vector<2x192xf32> to vector<2x64xf32>
    %342 = vector.extract_strided_slice %338 {offsets = [0, 64], sizes = [2, 64], strides = [1, 1]} : vector<2x192xf32> to vector<2x64xf32>
    %343 = vector.extract_strided_slice %338 {offsets = [0, 128], sizes = [2, 64], strides = [1, 1]} : vector<2x192xf32> to vector<2x64xf32>
    %344 = arith.mulf %342, %322 : vector<2x64xf32>
    %345 = arith.mulf %341, %340 : vector<2x64xf32>
    %346 = arith.addf %344, %345 : vector<2x64xf32>
    %347 = math.tanh %346 : vector<2x64xf32>
    %348 = arith.mulf %343, %347 : vector<2x64xf32>
    %349 = arith.addf %325, %348 : vector<2x64xf32>
    %350 = vector.extract_strided_slice %178 {offsets = [14, 0], sizes = [2, 256], strides = [1, 1]} : vector<16x256xf32> to vector<2x256xf32>
    %351 = vector.extract_strided_slice %178 {offsets = [0, 0], sizes = [2, 256], strides = [1, 1]} : vector<16x256xf32> to vector<2x256xf32>
    %352 = vector.shape_cast %19 : vector<1x256xi1> to vector<1x256xi1>
    %353 = vector.broadcast %352 : vector<1x256xi1> to vector<2x256xi1>
    %354 = arith.select %353, %350, %351 : vector<2x256xi1>, vector<2x256xf32>
    %cst_56 = arith.constant dense<0.000000e+00> : vector<2x256xf32>
    %355 = tpu.matmul %348, %16, %cst_56 {dimension_numbers = #tpu.dot_dimension_numbers<[1], [0], [0], [1], [0, 0, 1, 1], [], []>} : vector<2x64xf32>, vector<64x256xf32>, vector<2x256xf32> -> vector<2x256xf32>
    %356 = arith.addf %354, %355 : vector<2x256xf32>
    %357 = vector.extract_strided_slice %356 {offsets = [0, 0], sizes = [2, 192], strides = [1, 1]} : vector<2x256xf32> to vector<2x192xf32>
    %358 = arith.negf %357 : vector<2x192xf32>
    %359 = math.exp %358 : vector<2x192xf32>
    %cst_57 = arith.constant 1.000000e+00 : f32
    %360 = vector.broadcast %cst_57 : f32 to vector<2x192xf32>
    %361 = arith.addf %360, %359 : vector<2x192xf32>
    %362 = arith.divf %360, %361 : vector<2x192xf32>
    %363 = vector.extract_strided_slice %356 {offsets = [0, 192], sizes = [2, 64], strides = [1, 1]} : vector<2x256xf32> to vector<2x64xf32>
    %364 = math.tanh %363 : vector<2x64xf32>
    %365 = vector.extract_strided_slice %362 {offsets = [0, 0], sizes = [2, 64], strides = [1, 1]} : vector<2x192xf32> to vector<2x64xf32>
    %366 = vector.extract_strided_slice %362 {offsets = [0, 64], sizes = [2, 64], strides = [1, 1]} : vector<2x192xf32> to vector<2x64xf32>
    %367 = vector.extract_strided_slice %362 {offsets = [0, 128], sizes = [2, 64], strides = [1, 1]} : vector<2x192xf32> to vector<2x64xf32>
    %368 = arith.mulf %366, %346 : vector<2x64xf32>
    %369 = arith.mulf %365, %364 : vector<2x64xf32>
    %370 = arith.addf %368, %369 : vector<2x64xf32>
    %371 = math.tanh %370 : vector<2x64xf32>
    %372 = arith.mulf %367, %371 : vector<2x64xf32>
    %373 = arith.addf %349, %372 : vector<2x64xf32>
    %374 = vector.shape_cast %13 : vector<1x64xi1> to vector<1x64xi1>
    %375 = vector.broadcast %374 : vector<1x64xi1> to vector<2x64xi1>
    %376 = arith.select %375, %204, %372 : vector<2x64xi1>, vector<2x64xf32>
    %377 = vector.shape_cast %13 : vector<1x64xi1> to vector<1x64xi1>
    %378 = vector.broadcast %377 : vector<1x64xi1> to vector<2x64xi1>
    %379 = arith.select %378, %228, %348 : vector<2x64xi1>, vector<2x64xf32>
    %380 = vector.shape_cast %13 : vector<1x64xi1> to vector<1x64xi1>
    %381 = vector.broadcast %380 : vector<1x64xi1> to vector<2x64xi1>
    %382 = arith.select %381, %252, %324 : vector<2x64xi1>, vector<2x64xf32>
    %383 = vector.shape_cast %13 : vector<1x64xi1> to vector<1x64xi1>
    %384 = vector.broadcast %383 : vector<1x64xi1> to vector<2x64xi1>
    %385 = arith.select %384, %276, %300 : vector<2x64xi1>, vector<2x64xf32>
    %386 = vector.shape_cast %13 : vector<1x64xi1> to vector<1x64xi1>
    %387 = vector.broadcast %386 : vector<1x64xi1> to vector<2x64xi1>
    %388 = arith.select %387, %300, %276 : vector<2x64xi1>, vector<2x64xf32>
    %389 = vector.shape_cast %13 : vector<1x64xi1> to vector<1x64xi1>
    %390 = vector.broadcast %389 : vector<1x64xi1> to vector<2x64xi1>
    %391 = arith.select %390, %324, %252 : vector<2x64xi1>, vector<2x64xf32>
    %392 = vector.shape_cast %13 : vector<1x64xi1> to vector<1x64xi1>
    %393 = vector.broadcast %392 : vector<1x64xi1> to vector<2x64xi1>
    %394 = arith.select %393, %348, %228 : vector<2x64xi1>, vector<2x64xf32>
    %395 = vector.shape_cast %13 : vector<1x64xi1> to vector<1x64xi1>
    %396 = vector.broadcast %395 : vector<1x64xi1> to vector<2x64xi1>
    %397 = arith.select %396, %372, %204 : vector<2x64xi1>, vector<2x64xf32>
    %398 = tpu.concatenate %376, %379, %382, %385, %388, %391, %394, %397 in 0 : vector<2x64xf32>, vector<2x64xf32>, vector<2x64xf32>, vector<2x64xf32>, vector<2x64xf32>, vector<2x64xf32>, vector<2x64xf32>, vector<2x64xf32> -> vector<16x64xf32>
    %cst_58 = arith.constant dense<0.000000e+00> : vector<16x64xf32>
    %399 = tpu.matmul %398, %2, %cst_58 {dimension_numbers = #tpu.dot_dimension_numbers<[1], [0], [0], [1], [0, 0, 1, 1], [], []>} : vector<16x64xf32>, vector<64x64xf32>, vector<16x64xf32> -> vector<16x64xf32>
    %400 = vector.broadcast %3 : vector<1x64xf32> to vector<16x64xf32>
    %401 = arith.addf %399, %400 : vector<16x64xf32>
    %cst_59 = arith.constant dense<0.000000e+00> : vector<2x64xf32>
    %402 = tpu.matmul %373, %2, %cst_59 {dimension_numbers = #tpu.dot_dimension_numbers<[1], [0], [0], [1], [0, 0, 1, 1], [], []>} : vector<2x64xf32>, vector<64x64xf32>, vector<2x64xf32> -> vector<2x64xf32>
    %cst_60 = arith.constant 8.000000e+00 : f32
    %403 = vector.broadcast %cst_60 : f32 to vector<1x64xf32>
    %404 = arith.mulf %403, %3 : vector<1x64xf32>
    %405 = vector.broadcast %404 : vector<1x64xf32> to vector<2x64xf32>
    %406 = arith.addf %402, %405 : vector<2x64xf32>
    %cst_61 = arith.constant dense<0.000000e+00> : vector<2x32xf32>
    %407 = tpu.matmul %406, %4, %cst_61 {dimension_numbers = #tpu.dot_dimension_numbers<[1], [0], [0], [1], [0, 0, 1, 1], [], []>} : vector<2x64xf32>, vector<64x32xf32>, vector<2x32xf32> -> vector<2x32xf32>
    %408 = vector.broadcast %5 : vector<1x32xf32> to vector<2x32xf32>
    %409 = arith.addf %407, %408 : vector<2x32xf32>
    %cst_62 = arith.constant 0.000000e+00 : f32
    %410 = vector.broadcast %cst_62 : f32 to vector<2x32xf32>
    %411 = arith.cmpf ogt, %409, %410 : vector<2x32xf32>
    %cst_63 = arith.constant 2.000000e-01 : f32
    %412 = vector.broadcast %cst_63 : f32 to vector<2x32xf32>
    %413 = arith.mulf %412, %409 : vector<2x32xf32>
    %414 = arith.select %411, %409, %413 : vector<2x32xi1>, vector<2x32xf32>
    %cst_64 = arith.constant dense<0.000000e+00> : vector<2x64xf32>
    %415 = tpu.matmul %414, %6, %cst_64 {dimension_numbers = #tpu.dot_dimension_numbers<[1], [0], [0], [1], [0, 0, 1, 1], [], []>} : vector<2x32xf32>, vector<32x64xf32>, vector<2x64xf32> -> vector<2x64xf32>
    %416 = vector.broadcast %7 : vector<1x64xf32> to vector<2x64xf32>
    %417 = arith.addf %415, %416 : vector<2x64xf32>
    %418 = tpu.concatenate %175, %401 in 1 : vector<16x64xf32>, vector<16x64xf32> -> vector<16x128xf32>
    %c0_65 = arith.constant 0 : index
    %c0_66 = arith.constant 0 : index
    %419 = vector.load %arg4[%c0_65, %c0_66] : memref<18x128xf32, #tpu.memory_space<vmem>>, vector<16x128xf32>
    tpu.vector_store %arg4[%c0_65, %c0_66], %418 {strides = array<i32>} : memref<18x128xf32, #tpu.memory_space<vmem>>, vector<16x128xf32>,
    %420 = tpu.concatenate %406, %417 in 1 : vector<2x64xf32>, vector<2x64xf32> -> vector<2x128xf32>
    %c16 = arith.constant 16 : index
    %c0_67 = arith.constant 0 : index
    %421 = vector.load %arg4[%c16, %c0_67] : memref<18x128xf32, #tpu.memory_space<vmem>>, vector<2x128xf32>
    tpu.vector_store %arg4[%c16, %c0_67], %420 {strides = array<i32>} : memref<18x128xf32, #tpu.memory_space<vmem>>, vector<2x128xf32>,
    return
  }
}

</mosaic_0001>

<llo_original>
// kernel: shared_model_forward.1
$region0: #{shared_model_forward.1}
  #allocation0 [shape = 'u32[]', space=smem, size = 0x4, offset = 0x4, fixed_abs, tag = 'smem constant byte address 0x4 - core index']
  #allocation1 [shape = 'u32[72,128]{1,0:T(1,128)}', space=vmem, size = 0x9000, scoped, tag = 'internal scratch']
  %s0 = inlined_call_operand.vmem [shape: s32[112,1], index: 0, kind: input, shape index: {}]
  %s1 = inlined_call_operand.vmem [shape: f32[16,32], index: 1, kind: input, shape index: {}]
  %s2 = inlined_call_operand.hbm [shape: f32[256,128], index: 2, kind: input, shape index: {}]
  %s3 = inlined_call_operand.hbm [shape: f32[144,256], index: 3, kind: input, shape index: {}]
  %s4 = inlined_call_operand.vmem [shape: f32[18,128], index: 4, kind: output, shape index: {}]
  %s5 = sld [smem:[#allocation0]]
  $region34: #{shared_model_forward.1} parent=0
    _
  %s7 = ssub.s32 1, %s5
  %s8 = scalar_select 0, %s7, %s5
  $region1: #{shared_model_forward.1} parent=0
    #allocation2 [shape = 'u8[131072]{0}', space=vmem, size = 0x20000, scoped, tag = 'input window, operand 2, single buffered']
    #allocation3 [shape = 's32[1]{0}', space=sflag, size = 0x4, scoped, tag = 'scoped memory for shared_model_forward.1']
    #allocation4 [shape = 'u8[147456]{0}', space=vmem, size = 0x24000, scoped, tag = 'input window, operand 3, single buffered']
    #allocation5 [shape = 's32[1]{0}', space=sflag, size = 0x4, scoped, tag = 'scoped memory for shared_model_forward.1']
    %9 = vsyncpa [#allocation3], 0
    %10 = vsyncpa [#allocation5], 0
    // Predicated region
    $region2: #{shared_model_forward.1} parent=1 // pred_check
      _
    $region3: #{shared_model_forward.1} parent=1 // pred_check_branch
      %12 = sbr.rel (0) target = $region5
    $region4: #{shared_model_forward.1} parent=1 // pred_region
      _
    $region5: #{shared_model_forward.1} parent=1 // pred_fallthru
      _
    // Predicated region
    $region6: #{shared_model_forward.1} parent=1 // pred_check
      _
    $region7: #{shared_model_forward.1} parent=1 // pred_check_branch
      %14 = sbr.rel (0) target = $region9
    $region8: #{shared_model_forward.1} parent=1 // pred_region
      _
    $region9: #{shared_model_forward.1} parent=1 // pred_fallthru
      _
    // Predicated region
    $region10: #{shared_model_forward.1} parent=1 // pred_check
      _
    $region11: #{shared_model_forward.1} parent=1 // pred_check_branch
      %16 = sbr.rel (0) target = $region13
    $region12: #{shared_model_forward.1} parent=1 // pred_region
      %18 = vsyncadd [#allocation3], 0
      %s19 = sshll.u32 %s2, 4
      %s20 = int_to_ptr.hbm [resolvable:$true] %s19
      %s21 = sshll.u32 [#allocation2], 4
      %s22 = int_to_ptr.vmem [resolvable:$true] %s21
      %27 = dma.hbm_to_vmem [thread:$0]  %s20, 4096, %s22, [#allocation3], 128, 128, 8
    $region13: #{shared_model_forward.1} parent=1 // pred_fallthru
      _
    // Predicated region
    $region14: #{shared_model_forward.1} parent=1 // pred_check
      _
    $region15: #{shared_model_forward.1} parent=1 // pred_check_branch
      %29 = sbr.rel (0) target = $region17
    $region16: #{shared_model_forward.1} parent=1 // pred_region
      %31 = vsyncadd [#allocation5], 0
      %s32 = sshll.u32 %s3, 4
      %s33 = int_to_ptr.hbm [resolvable:$true] %s32
      %s34 = sshll.u32 [#allocation4], 4
      %s35 = int_to_ptr.vmem [resolvable:$true] %s34
      %40 = dma.hbm_to_vmem [thread:$0]  %s33, 4608, %s35, [#allocation5], 256, 256, 16
    $region17: #{shared_model_forward.1} parent=1 // pred_fallthru
      _
    // Predicated region
    $region18: #{shared_model_forward.1} parent=1 // pred_check
      _
    $region19: #{shared_model_forward.1} parent=1 // pred_check_branch
      %42 = sbr.rel (0) target = $region21
    $region20: #{shared_model_forward.1} parent=1 // pred_region
      %44 = dma.done [#allocation3], 4096
    $region21: #{shared_model_forward.1} parent=1 // pred_fallthru
      _
    // Predicated region
    $region22: #{shared_model_forward.1} parent=1 // pred_check
      _
    $region23: #{shared_model_forward.1} parent=1 // pred_check_branch
      %46 = sbr.rel (0) target = $region25
    $region24: #{shared_model_forward.1} parent=1 // pred_region
      %48 = dma.done [#allocation5], 4608
    $region25: #{shared_model_forward.1} parent=1 // pred_fallthru
      _
    %v49 = vld [vmem:[#allocation2] sm:$0xff]
    %v50 = vld [vmem:[#allocation2 + $0x8] sm:$0xff]
    %v51 = vld [vmem:[#allocation2 + $0x10] sm:$0xff]
    %v52 = vld [vmem:[#allocation2 + $0x18] sm:$0xff]
    %v53 = vld [vmem:[#allocation2 + $0x20] sm:$0xff]
    %v54 = vld [vmem:[#allocation2 + $0x28] sm:$0xff]
    %v55 = vld [vmem:[#allocation2 + $0x30] sm:$0xff]
    %v56 = vld [vmem:[#allocation2 + $0x38] sm:$0xff]
    %v57 = vld [vmem:[#allocation2 + $0x40] sm:$0xff]
    %v58 = vld [vmem:[#allocation2 + $0x48] sm:$0xff]
    %v59 = vld [vmem:[#allocation2 + $0x50] sm:$0xff]
    %v60 = vld [vmem:[#allocation2 + $0x58] sm:$0xff]
    %v61 = vld [vmem:[#allocation2 + $0x60] sm:$0xff]
    %v62 = vld [vmem:[#allocation2 + $0x68] sm:$0xff]
    %v63 = vld [vmem:[#allocation2 + $0x70] sm:$0xff]
    %v64 = vld [vmem:[#allocation2 + $0x78] sm:$0x1]
    %v65 = vld [vmem:[#allocation2 + $0x80] sm:$0xff]
    %v66 = vld [vmem:[#allocation2 + $0x88] sm:$0xff]
    %v67 = vld [vmem:[#allocation2 + $0x90] sm:$0xff]
    %v68 = vld [vmem:[#allocation2 + $0x98] sm:$0xff]
    %v69 = vld [vmem:[#allocation2 + $0xa0] sm:$0xff]
    %v70 = vld [vmem:[#allocation2 + $0xa8] sm:$0xff]
    %v71 = vld [vmem:[#allocation2 + $0xb0] sm:$0xff]
    %v72 = vld [vmem:[#allocation2 + $0xb8] sm:$0xff]
    %v73 = vld [vmem:[#allocation2 + $0xc0] sm:$0x1]
    %v74 = vld [vmem:[#allocation2 + $0xc8] sm:$0xff]
    %v75 = vld [vmem:[#allocation2 + $0xd0] sm:$0xff]
    %v76 = vld [vmem:[#allocation2 + $0xd8] sm:$0xff]
    %v77 = vld [vmem:[#allocation2 + $0xe0] sm:$0xff]
    %v78 = vld [vmem:[#allocation2 + $0xe8] sm:$0x1]
    %v79 = vld [vmem:[#allocation2 + $0xf0] sm:$0x1]
    %vm80 = vcmp.gt.f32.partialorder %v79, 0.5
    %v81 = vld [vmem:[#allocation2 + $0xf8] sm:$0x1]
    %vm82 = vcmp.gt.f32.partialorder %v81, 0.5
    %v83 = vld [vmem:[#allocation4] sm:$0xff]
    %v84 = vld [vmem:[#allocation4 + $0x8] sm:$0xff]
    %v85 = vld [vmem:[#allocation4 + $0x10] sm:$0xff]
    %v86 = vld [vmem:[#allocation4 + $0x18] sm:$0xff]
    %v87 = vld [vmem:[#allocation4 + $0x20] sm:$0xff]
    %v88 = vld [vmem:[#allocation4 + $0x28] sm:$0xff]
    %v89 = vld [vmem:[#allocation4 + $0x30] sm:$0xff]
    %v90 = vld [vmem:[#allocation4 + $0x38] sm:$0xff]
    %v91 = vld [vmem:[#allocation4 + $0x40] sm:$0xff]
    %v92 = vld [vmem:[#allocation4 + $0x48] sm:$0xff]
    %v93 = vld [vmem:[#allocation4 + $0x50] sm:$0xff]
    %v94 = vld [vmem:[#allocation4 + $0x58] sm:$0xff]
    %v95 = vld [vmem:[#allocation4 + $0x60] sm:$0xff]
    %v96 = vld [vmem:[#allocation4 + $0x68] sm:$0xff]
    %v97 = vld [vmem:[#allocation4 + $0x70] sm:$0xff]
    %v98 = vld [vmem:[#allocation4 + $0x78] sm:$0xff]
    %s99 = scalar_lea.vmem [#allocation4], 128
    %v100 = vld [vmem:[%s99] ss:$8 sm:$0x3]
    %v101 = vld [vmem:[#allocation4 + $0x90] sm:$0xff]
    %v102 = vld [vmem:[#allocation4 + $0x98] sm:$0xff]
    %v103 = vld [vmem:[#allocation4 + $0xa0] sm:$0xff]
    %v104 = vld [vmem:[#allocation4 + $0xa8] sm:$0xff]
    %v105 = vld [vmem:[#allocation4 + $0xb0] sm:$0xff]
    %v106 = vld [vmem:[#allocation4 + $0xb8] sm:$0xff]
    %v107 = vld [vmem:[#allocation4 + $0xc0] sm:$0xff]
    %v108 = vld [vmem:[#allocation4 + $0xc8] sm:$0xff]
    %v109 = vld [vmem:[#allocation4 + $0xd0] sm:$0xff]
    %v110 = vld [vmem:[#allocation4 + $0xd8] sm:$0xff]
    %v111 = vld [vmem:[#allocation4 + $0xe0] sm:$0xff]
    %v112 = vld [vmem:[#allocation4 + $0xe8] sm:$0xff]
    %v113 = vld [vmem:[#allocation4 + $0xf0] sm:$0xff]
    %v114 = vld [vmem:[#allocation4 + $0xf8] sm:$0xff]
    %v115 = vld [vmem:[#allocation4 + $0x100] sm:$0xff]
    %v116 = vld [vmem:[#allocation4 + $0x108] sm:$0xff]
    %s117 = scalar_lea.vmem [#allocation4], 272
    %v118 = vld [vmem:[%s117] ss:$8 sm:$0x3]
    %vm119 = vcmp.gt.f32.partialorder %v118, 0.5
    %v120 = vld [vmem:[%s0] sm:$0xff]
    %v121 = vld [vmem:[%s0 + $0x8] sm:$0xff]
    %v122 = vld [vmem:[%s0 + $0x10] sm:$0xff]
    %v123 = vld [vmem:[%s0 + $0x18] sm:$0xff]
    %v124 = vld [vmem:[%s0 + $0x20] sm:$0xff]
    %v125 = vld [vmem:[%s0 + $0x28] sm:$0xff]
    %v126 = vld [vmem:[%s0 + $0x30] sm:$0xff]
    %v127 = vld [vmem:[%s0 + $0x38] sm:$0xff]
    %v128 = vld [vmem:[%s0 + $0x40] sm:$0xff]
    %v129 = vld [vmem:[%s0 + $0x48] sm:$0xff]
    %v130 = vld [vmem:[%s0 + $0x50] sm:$0xff]
    %v131 = vld [vmem:[%s0 + $0x58] sm:$0xff]
    %v132 = vlaneseq
    %v133 = vand.u32 %v132, 127
    %134 = vset.pattern.permute.xlu0 0
    %135 = vperm.xlu0 %134, %v120
    %v136 = vpop.permute.xlu0 %135
    %137 = vset.pattern.permute.xlu0 0
    %138 = vperm.xlu0 %137, %v121
    %v139 = vpop.permute.xlu0 %138
    %140 = vset.pattern.permute.xlu0 0
    %141 = vperm.xlu0 %140, %v122
    %v142 = vpop.permute.xlu0 %141
    %143 = vset.pattern.permute.xlu0 0
    %144 = vperm.xlu0 %143, %v123
    %v145 = vpop.permute.xlu0 %144
    %146 = vset.pattern.permute.xlu0 0
    %147 = vperm.xlu0 %146, %v124
    %v148 = vpop.permute.xlu0 %147
    %149 = vset.pattern.permute.xlu0 0
    %150 = vperm.xlu0 %149, %v125
    %v151 = vpop.permute.xlu0 %150
    %152 = vset.pattern.permute.xlu0 0
    %153 = vperm.xlu0 %152, %v126
    %v154 = vpop.permute.xlu0 %153
    %155 = vset.pattern.permute.xlu0 0
    %156 = vperm.xlu0 %155, %v127
    %v157 = vpop.permute.xlu0 %156
    %158 = vset.pattern.permute.xlu0 0
    %159 = vperm.xlu0 %158, %v128
    %v160 = vpop.permute.xlu0 %159
    %161 = vset.pattern.permute.xlu0 0
    %162 = vperm.xlu0 %161, %v129
    %v163 = vpop.permute.xlu0 %162
    %164 = vset.pattern.permute.xlu0 0
    %165 = vperm.xlu0 %164, %v130
    %v166 = vpop.permute.xlu0 %165
    %167 = vset.pattern.permute.xlu0 0
    %168 = vperm.xlu0 %167, %v131
    %v169 = vpop.permute.xlu0 %168
    %vm170 = vcmp.eq.s32.totalorder %v136, %v133
    %vm171 = vcmp.eq.s32.totalorder %v139, %v133
    %vm172 = vcmp.eq.s32.totalorder %v142, %v133
    %vm173 = vcmp.eq.s32.totalorder %v145, %v133
    %vm174 = vcmp.eq.s32.totalorder %v148, %v133
    %vm175 = vcmp.eq.s32.totalorder %v151, %v133
    %vm176 = vcmp.eq.s32.totalorder %v154, %v133
    %vm177 = vcmp.eq.s32.totalorder %v157, %v133
    %vm178 = vcmp.eq.s32.totalorder %v160, %v133
    %vm179 = vcmp.eq.s32.totalorder %v163, %v133
    %vm180 = vcmp.eq.s32.totalorder %v166, %v133
    %vm181 = vcmp.eq.s32.totalorder %v169, %v133
    %v182 = vsel %vm170, 1, 0
    %v183 = vsel %vm171, 1, 0
    %v184 = vsel %vm172, 1, 0
    %v185 = vsel %vm173, 1, 0
    %v186 = vsel %vm174, 1, 0
    %v187 = vsel %vm175, 1, 0
    %v188 = vsel %vm176, 1, 0
    %v189 = vsel %vm177, 1, 0
    %v190 = vsel %vm178, 1, 0
    %v191 = vsel %vm179, 1, 0
    %v192 = vsel %vm180, 1, 0
    %v193 = vsel %vm181, 1, 0
    %v194 = vcvt.s32.f32 %v182
    %v195 = vcvt.s32.f32 %v183
    %v196 = vcvt.s32.f32 %v184
    %v197 = vcvt.s32.f32 %v185
    %v198 = vcvt.s32.f32 %v186
    %v199 = vcvt.s32.f32 %v187
    %v200 = vcvt.s32.f32 %v188
    %v201 = vcvt.s32.f32 %v189
    %v202 = vcvt.s32.f32 %v190
    %v203 = vcvt.s32.f32 %v191
    %v204 = vcvt.s32.f32 %v192
    %v205 = vcvt.s32.f32 %v193
    %vm206 = vcmask 195584
    %v208 = vsel %vm206, %v194, 0
    %v211 = vsel %vm206, %v195, 0
    %v214 = vsel %vm206, %v196, 0
    %v217 = vsel %vm206, %v197, 0
    %v220 = vsel %vm206, %v198, 0
    %v223 = vsel %vm206, %v199, 0
    %v226 = vsel %vm206, %v200, 0
    %v229 = vsel %vm206, %v201, 0
    %v232 = vsel %vm206, %v202, 0
    %v235 = vsel %vm206, %v203, 0
    %v238 = vsel %vm206, %v204, 0
    %v241 = vsel %vm206, %v205, 0
    %243 = vmatpush.msra.mxu0 0.0
    %244 = vmatpush.msra.mxu0 0.0
    %245 = vmatpush.msra.mxu0 0.0
    %246 = vmatpush.msra.mxu0 0.0
    %247 = vmatpush.msra.mxu0 0.0
    %248 = vmatpush.msra.mxu0 0.0
    %249 = vmatpush.msra.mxu0 0.0
    %250 = vmatpush.msra.mxu0 0.0
    %251 = vmatpush.msra.mxu0 0.0
    %252 = vmatpush.msra.mxu0 0.0
    %253 = vmatpush.msra.mxu0 0.0
    %254 = vmatpush.msra.mxu0 0.0
    %255 = vmatpush.msra.mxu0 0.0
    %256 = vmatpush.msra.mxu0 %v51
    %257 = vmatpush.msra.mxu0 %v50
    %258 = vmatpush.msra.mxu0 %v49
    %259 = vmatmul.f32.gmra.mxu0 %v208
    %v260 = vpop.f32.mrf.mxu0
    %v261 = vadd.f32 0.0, %v260
    %262 = vmatmul.f32.gmra.mxu0 %v211
    %v263 = vpop.f32.mrf.mxu0
    %v264 = vadd.f32 0.0, %v263
    %265 = vmatmul.f32.gmra.mxu0 %v214
    %v266 = vpop.f32.mrf.mxu0
    %v267 = vadd.f32 0.0, %v266
    %268 = vmatmul.f32.gmra.mxu0 %v217
    %v269 = vpop.f32.mrf.mxu0
    %v270 = vadd.f32 0.0, %v269
    %271 = vmatmul.f32.gmra.mxu0 %v220
    %v272 = vpop.f32.mrf.mxu0
    %v273 = vadd.f32 0.0, %v272
    %274 = vmatmul.f32.gmra.mxu0 %v223
    %v275 = vpop.f32.mrf.mxu0
    %v276 = vadd.f32 0.0, %v275
    %277 = vmatmul.f32.gmra.mxu0 %v226
    %v278 = vpop.f32.mrf.mxu0
    %v279 = vadd.f32 0.0, %v278
    %280 = vmatmul.f32.gmra.mxu0 %v229
    %v281 = vpop.f32.mrf.mxu0
    %v282 = vadd.f32 0.0, %v281
    %283 = vmatmul.f32.gmra.mxu0 %v232
    %v284 = vpop.f32.mrf.mxu0
    %v285 = vadd.f32 0.0, %v284
    %286 = vmatmul.f32.gmra.mxu0 %v235
    %v287 = vpop.f32.mrf.mxu0
    %v288 = vadd.f32 0.0, %v287
    %289 = vmatmul.f32.gmra.mxu0 %v238
    %v290 = vpop.f32.mrf.mxu0
    %v291 = vadd.f32 0.0, %v290
    %292 = vmatmul.f32.gmra.mxu0 %v241
    %v293 = vpop.f32.mrf.mxu0
    %v294 = vadd.f32 0.0, %v293
    %295 = vdwg.mxu0
    %v296 = vsel %vm80, 1, 0
    %v297 = vperm.slane %v296, 0
    %vm298 = vcmp.eq.s32.totalorder %v297, 1
    %v299 = vsel %vm298, %v261, %v291
    %v300 = vsel %vm298, %v264, %v294
    %vm301 = vcmask 261120
    %v303 = vsel %vm301, 0.0, 0
    %305 = vmatpush.msra.mxu0 0.0
    %306 = vmatpush.msra.mxu0 0.0
    %307 = vmatpush.msra.mxu0 0.0
    %308 = vmatpush.msra.mxu0 0.0
    %309 = vmatpush.msra.mxu0 0.0
    %310 = vmatpush.msra.mxu0 0.0
    %311 = vmatpush.msra.mxu0 0.0
    %312 = vmatpush.msra.mxu0 0.0
    %313 = vmatpush.msra.mxu0 0.0
    %314 = vmatpush.msra.mxu0 0.0
    %315 = vmatpush.msra.mxu0 0.0
    %316 = vmatpush.msra.mxu0 0.0
    %317 = vmatpush.msra.mxu0 %v55
    %318 = vmatpush.msra.mxu0 %v54
    %319 = vmatpush.msra.mxu0 %v53
    %320 = vmatpush.msra.mxu0 %v52
    %321 = vmatmul.f32.gmra.mxu0 %v303
    %v322 = vpop.f32.mrf.mxu0
    %v323 = vadd.f32 0.0, %v322
    %324 = vmatmul.f32.gmra.mxu0 %v303
    %v325 = vpop.f32.mrf.mxu0
    %v326 = vadd.f32 0.0, %v325
    %327 = vdwg.mxu0
    %v328 = vadd.f32 %v299, %v323
    %v329 = vadd.f32 %v300, %v326
    %v330 = vxor.u32 %v328, 2147483648
    %v331 = vxor.u32 %v329, 2147483648
    %v332 = vmul.f32 %v330, 1.442695
    %v333 = vpow.pop %v332
    %v334 = vmul.f32 %v331, 1.442695
    %v335 = vpow.pop %v334
    %v336 = vadd.f32 %v333, 1.0
    %v337 = vadd.f32 %v335, 1.0
    %v338 = vrcp.pop %v336
    %v339 = vmul.f32 %v336, %v338
    %v340 = vsub.f32 1.0, %v339
    %v341 = vmul.f32 %v338, %v340
    %v342 = vadd.f32 %v338, %v341
    %vm343 = vweird.f32 %v336
    %vm344 = vweird.f32 %v338
    %vm345 = vmor %vm343, %vm344
    %v346 = vsel %vm345, %v338, %v342
    %v347 = vand.u32 2147483647, %v336
    %vm348 = vcmp.eq.f32.partialorder %v347, 8.507059e+37
    %v349 = vand.u32 %v336, 2147483648
    %v350 = vor.u32 1.1754944e-38, %v349
    %v351 = vsel %vm348, %v350, %v346
    %v352 = vmul.f32 1.0, %v351
    %v353 = vrcp.pop %v337
    %v354 = vmul.f32 %v337, %v353
    %v355 = vsub.f32 1.0, %v354
    %v356 = vmul.f32 %v353, %v355
    %v357 = vadd.f32 %v353, %v356
    %vm358 = vweird.f32 %v337
    %vm359 = vweird.f32 %v353
    %vm360 = vmor %vm358, %vm359
    %v361 = vsel %vm360, %v353, %v357
    %v362 = vand.u32 2147483647, %v337
    %vm363 = vcmp.eq.f32.partialorder %v362, 8.507059e+37
    %v364 = vand.u32 %v337, 2147483648
    %v365 = vor.u32 1.1754944e-38, %v364
    %v366 = vsel %vm363, %v365, %v361
    %v367 = vmul.f32 1.0, %v366
    %v368 = vtanh.pop %v328
    %v369 = vtanh.pop %v329
    %v370 = vmul.f32 %v352, 0.0
    %v371 = vmul.f32 %v367, 0.0
    %374 = vrot.lane.b32.xlu0 %v368, 32
    %v375 = vpop.permute.xlu0 %374
    %376 = vrot.lane.b32.xlu0 %v369, 32
    %v377 = vpop.permute.xlu0 %376
    %v380 = vmul.f32 %v352, %v375
    %v381 = vmul.f32 %v367, %v377
    %384 = vrot.lane.b32.xlu0 %v380, 32
    %v385 = vpop.permute.xlu0 %384
    %386 = vrot.lane.b32.xlu0 %v381, 32
    %v387 = vpop.permute.xlu0 %386
    %v390 = vadd.f32 %v370, %v385
    %v391 = vadd.f32 %v371, %v387
    %v392 = vtanh.pop %v390
    %v393 = vtanh.pop %v391
    %396 = vrot.lane.b32.xlu0 %v392, 32
    %v397 = vpop.permute.xlu0 %396
    %398 = vrot.lane.b32.xlu0 %v393, 32
    %v399 = vpop.permute.xlu0 %398
    %v402 = vmul.f32 %v352, %v397
    %v403 = vmul.f32 %v367, %v399
    %v404 = vsel %vm298, %v267, %v285
    %v405 = vsel %vm298, %v270, %v288
    %408 = vrot.lane.b32.xlu0 %v402, 64
    %v409 = vpop.permute.xlu0 %408
    %410 = vrot.lane.b32.xlu0 %v403, 64
    %v411 = vpop.permute.xlu0 %410
    %v412 = vsel %vm301, %v409, 0
    %v414 = vsel %vm301, %v411, 0
    %416 = vmatpush.msra.mxu0 0.0
    %417 = vmatpush.msra.mxu0 0.0
    %418 = vmatpush.msra.mxu0 0.0
    %419 = vmatpush.msra.mxu0 0.0
    %420 = vmatpush.msra.mxu0 0.0
    %421 = vmatpush.msra.mxu0 0.0
    %422 = vmatpush.msra.mxu0 0.0
    %423 = vmatpush.msra.mxu0 0.0
    %424 = vmatpush.msra.mxu0 0.0
    %425 = vmatpush.msra.mxu0 0.0
    %426 = vmatpush.msra.mxu0 0.0
    %427 = vmatpush.msra.mxu0 0.0
    %428 = vmatpush.msra.mxu0 %v55
    %429 = vmatpush.msra.mxu0 %v54
    %430 = vmatpush.msra.mxu0 %v53
    %431 = vmatpush.msra.mxu0 %v52
    %432 = vmatmul.f32.gmra.mxu0 %v412
    %v433 = vpop.f32.mrf.mxu0
    %v434 = vadd.f32 0.0, %v433
    %435 = vmatmul.f32.gmra.mxu0 %v414
    %v436 = vpop.f32.mrf.mxu0
    %v437 = vadd.f32 0.0, %v436
    %438 = vdwg.mxu0
    %v439 = vadd.f32 %v404, %v434
    %v440 = vadd.f32 %v405, %v437
    %v441 = vxor.u32 %v439, 2147483648
    %v442 = vxor.u32 %v440, 2147483648
    %v443 = vmul.f32 %v441, 1.442695
    %v444 = vpow.pop %v443
    %v445 = vmul.f32 %v442, 1.442695
    %v446 = vpow.pop %v445
    %v447 = vadd.f32 %v444, 1.0
    %v448 = vadd.f32 %v446, 1.0
    %v449 = vrcp.pop %v447
    %v450 = vmul.f32 %v447, %v449
    %v451 = vsub.f32 1.0, %v450
    %v452 = vmul.f32 %v449, %v451
    %v453 = vadd.f32 %v449, %v452
    %vm454 = vweird.f32 %v447
    %vm455 = vweird.f32 %v449
    %vm456 = vmor %vm454, %vm455
    %v457 = vsel %vm456, %v449, %v453
    %v458 = vand.u32 2147483647, %v447
    %vm459 = vcmp.eq.f32.partialorder %v458, 8.507059e+37
    %v460 = vand.u32 %v447, 2147483648
    %v461 = vor.u32 1.1754944e-38, %v460
    %v462 = vsel %vm459, %v461, %v457
    %v463 = vmul.f32 1.0, %v462
    %v464 = vrcp.pop %v448
    %v465 = vmul.f32 %v448, %v464
    %v466 = vsub.f32 1.0, %v465
    %v467 = vmul.f32 %v464, %v466
    %v468 = vadd.f32 %v464, %v467
    %vm469 = vweird.f32 %v448
    %vm470 = vweird.f32 %v464
    %vm471 = vmor %vm469, %vm470
    %v472 = vsel %vm471, %v464, %v468
    %v473 = vand.u32 2147483647, %v448
    %vm474 = vcmp.eq.f32.partialorder %v473, 8.507059e+37
    %v475 = vand.u32 %v448, 2147483648
    %v476 = vor.u32 1.1754944e-38, %v475
    %v477 = vsel %vm474, %v476, %v472
    %v478 = vmul.f32 1.0, %v477
    %v479 = vtanh.pop %v439
    %v480 = vtanh.pop %v440
    %v481 = vmul.f32 %v463, %v390
    %v482 = vmul.f32 %v478, %v391
    %485 = vrot.lane.b32.xlu0 %v479, 32
    %v486 = vpop.permute.xlu0 %485
    %487 = vrot.lane.b32.xlu0 %v480, 32
    %v488 = vpop.permute.xlu0 %487
    %v491 = vmul.f32 %v463, %v486
    %v492 = vmul.f32 %v478, %v488
    %495 = vrot.lane.b32.xlu0 %v491, 32
    %v496 = vpop.permute.xlu0 %495
    %497 = vrot.lane.b32.xlu0 %v492, 32
    %v498 = vpop.permute.xlu0 %497
    %v501 = vadd.f32 %v481, %v496
    %v502 = vadd.f32 %v482, %v498
    %v503 = vtanh.pop %v501
    %v504 = vtanh.pop %v502
    %507 = vrot.lane.b32.xlu0 %v503, 32
    %v508 = vpop.permute.xlu0 %507
    %509 = vrot.lane.b32.xlu0 %v504, 32
    %v510 = vpop.permute.xlu0 %509
    %v513 = vmul.f32 %v463, %v508
    %v514 = vmul.f32 %v478, %v510
    %v515 = vsel %vm298, %v273, %v279
    %v516 = vsel %vm298, %v276, %v282
    %519 = vrot.lane.b32.xlu0 %v513, 64
    %v520 = vpop.permute.xlu0 %519
    %521 = vrot.lane.b32.xlu0 %v514, 64
    %v522 = vpop.permute.xlu0 %521
    %v523 = vsel %vm301, %v520, 0
    %v525 = vsel %vm301, %v522, 0
    %527 = vmatpush.msra.mxu0 0.0
    %528 = vmatpush.msra.mxu0 0.0
    %529 = vmatpush.msra.mxu0 0.0
    %530 = vmatpush.msra.mxu0 0.0
    %531 = vmatpush.msra.mxu0 0.0
    %532 = vmatpush.msra.mxu0 0.0
    %533 = vmatpush.msra.mxu0 0.0
    %534 = vmatpush.msra.mxu0 0.0
    %535 = vmatpush.msra.mxu0 0.0
    %536 = vmatpush.msra.mxu0 0.0
    %537 = vmatpush.msra.mxu0 0.0
    %538 = vmatpush.msra.mxu0 0.0
    %539 = vmatpush.msra.mxu0 %v55
    %540 = vmatpush.msra.mxu0 %v54
    %541 = vmatpush.msra.mxu0 %v53
    %542 = vmatpush.msra.mxu0 %v52
    %543 = vmatmul.f32.gmra.mxu0 %v523
    %v544 = vpop.f32.mrf.mxu0
    %v545 = vadd.f32 0.0, %v544
    %546 = vmatmul.f32.gmra.mxu0 %v525
    %v547 = vpop.f32.mrf.mxu0
    %v548 = vadd.f32 0.0, %v547
    %549 = vdwg.mxu0
    %v550 = vadd.f32 %v515, %v545
    %v551 = vadd.f32 %v516, %v548
    %v552 = vxor.u32 %v550, 2147483648
    %v553 = vxor.u32 %v551, 2147483648
    %v554 = vmul.f32 %v552, 1.442695
    %v555 = vpow.pop %v554
    %v556 = vmul.f32 %v553, 1.442695
    %v557 = vpow.pop %v556
    %v558 = vadd.f32 %v555, 1.0
    %v559 = vadd.f32 %v557, 1.0
    %v560 = vrcp.pop %v558
    %v561 = vmul.f32 %v558, %v560
    %v562 = vsub.f32 1.0, %v561
    %v563 = vmul.f32 %v560, %v562
    %v564 = vadd.f32 %v560, %v563
    %vm565 = vweird.f32 %v558
    %vm566 = vweird.f32 %v560
    %vm567 = vmor %vm565, %vm566
    %v568 = vsel %vm567, %v560, %v564
    %v569 = vand.u32 2147483647, %v558
    %vm570 = vcmp.eq.f32.partialorder %v569, 8.507059e+37
    %v571 = vand.u32 %v558, 2147483648
    %v572 = vor.u32 1.1754944e-38, %v571
    %v573 = vsel %vm570, %v572, %v568
    %v574 = vmul.f32 1.0, %v573
    %v575 = vrcp.pop %v559
    %v576 = vmul.f32 %v559, %v575
    %v577 = vsub.f32 1.0, %v576
    %v578 = vmul.f32 %v575, %v577
    %v579 = vadd.f32 %v575, %v578
    %vm580 = vweird.f32 %v559
    %vm581 = vweird.f32 %v575
    %vm582 = vmor %vm580, %vm581
    %v583 = vsel %vm582, %v575, %v579
    %v584 = vand.u32 2147483647, %v559
    %vm585 = vcmp.eq.f32.partialorder %v584, 8.507059e+37
    %v586 = vand.u32 %v559, 2147483648
    %v587 = vor.u32 1.1754944e-38, %v586
    %v588 = vsel %vm585, %v587, %v583
    %v589 = vmul.f32 1.0, %v588
    %v590 = vtanh.pop %v550
    %v591 = vtanh.pop %v551
    %v592 = vmul.f32 %v574, %v501
    %v593 = vmul.f32 %v589, %v502
    %596 = vrot.lane.b32.xlu0 %v590, 32
    %v597 = vpop.permute.xlu0 %596
    %598 = vrot.lane.b32.xlu0 %v591, 32
    %v599 = vpop.permute.xlu0 %598
    %v602 = vmul.f32 %v574, %v597
    %v603 = vmul.f32 %v589, %v599
    %606 = vrot.lane.b32.xlu0 %v602, 32
    %v607 = vpop.permute.xlu0 %606
    %608 = vrot.lane.b32.xlu0 %v603, 32
    %v609 = vpop.permute.xlu0 %608
    %v612 = vadd.f32 %v592, %v607
    %v613 = vadd.f32 %v593, %v609
    %v614 = vtanh.pop %v612
    %v615 = vtanh.pop %v613
    %618 = vrot.lane.b32.xlu0 %v614, 32
    %v619 = vpop.permute.xlu0 %618
    %620 = vrot.lane.b32.xlu0 %v615, 32
    %v621 = vpop.permute.xlu0 %620
    %v624 = vmul.f32 %v574, %v619
    %v625 = vmul.f32 %v589, %v621
    %v626 = vsel %vm298, %v279, %v273
    %v627 = vsel %vm298, %v282, %v276
    %630 = vrot.lane.b32.xlu0 %v624, 64
    %v631 = vpop.permute.xlu0 %630
    %632 = vrot.lane.b32.xlu0 %v625, 64
    %v633 = vpop.permute.xlu0 %632
    %v634 = vsel %vm301, %v631, 0
    %v636 = vsel %vm301, %v633, 0
    %638 = vmatpush.msra.mxu0 0.0
    %639 = vmatpush.msra.mxu0 0.0
    %640 = vmatpush.msra.mxu0 0.0
    %641 = vmatpush.msra.mxu0 0.0
    %642 = vmatpush.msra.mxu0 0.0
    %643 = vmatpush.msra.mxu0 0.0
    %644 = vmatpush.msra.mxu0 0.0
    %645 = vmatpush.msra.mxu0 0.0
    %646 = vmatpush.msra.mxu0 0.0
    %647 = vmatpush.msra.mxu0 0.0
    %648 = vmatpush.msra.mxu0 0.0
    %649 = vmatpush.msra.mxu0 0.0
    %650 = vmatpush.msra.mxu0 %v55
    %651 = vmatpush.msra.mxu0 %v54
    %652 = vmatpush.msra.mxu0 %v53
    %653 = vmatpush.msra.mxu0 %v52
    %654 = vmatmul.f32.gmra.mxu0 %v634
    %v655 = vpop.f32.mrf.mxu0
    %v656 = vadd.f32 0.0, %v655
    %657 = vmatmul.f32.gmra.mxu0 %v636
    %v658 = vpop.f32.mrf.mxu0
    %v659 = vadd.f32 0.0, %v658
    %660 = vdwg.mxu0
    %v661 = vadd.f32 %v626, %v656
    %v662 = vadd.f32 %v627, %v659
    %v663 = vxor.u32 %v661, 2147483648
    %v664 = vxor.u32 %v662, 2147483648
    %v665 = vmul.f32 %v663, 1.442695
    %v666 = vpow.pop %v665
    %v667 = vmul.f32 %v664, 1.442695
    %v668 = vpow.pop %v667
    %v669 = vadd.f32 %v666, 1.0
    %v670 = vadd.f32 %v668, 1.0
    %v671 = vrcp.pop %v669
    %v672 = vmul.f32 %v669, %v671
    %v673 = vsub.f32 1.0, %v672
    %v674 = vmul.f32 %v671, %v673
    %v675 = vadd.f32 %v671, %v674
    %vm676 = vweird.f32 %v669
    %vm677 = vweird.f32 %v671
    %vm678 = vmor %vm676, %vm677
    %v679 = vsel %vm678, %v671, %v675
    %v680 = vand.u32 2147483647, %v669
    %vm681 = vcmp.eq.f32.partialorder %v680, 8.507059e+37
    %v682 = vand.u32 %v669, 2147483648
    %v683 = vor.u32 1.1754944e-38, %v682
    %v684 = vsel %vm681, %v683, %v679
    %v685 = vmul.f32 1.0, %v684
    %v686 = vrcp.pop %v670
    %v687 = vmul.f32 %v670, %v686
    %v688 = vsub.f32 1.0, %v687
    %v689 = vmul.f32 %v686, %v688
    %v690 = vadd.f32 %v686, %v689
    %vm691 = vweird.f32 %v670
    %vm692 = vweird.f32 %v686
    %vm693 = vmor %vm691, %vm692
    %v694 = vsel %vm693, %v686, %v690
    %v695 = vand.u32 2147483647, %v670
    %vm696 = vcmp.eq.f32.partialorder %v695, 8.507059e+37
    %v697 = vand.u32 %v670, 2147483648
    %v698 = vor.u32 1.1754944e-38, %v697
    %v699 = vsel %vm696, %v698, %v694
    %v700 = vmul.f32 1.0, %v699
    %v701 = vtanh.pop %v661
    %v702 = vtanh.pop %v662
    %v703 = vmul.f32 %v685, %v612
    %v704 = vmul.f32 %v700, %v613
    %707 = vrot.lane.b32.xlu0 %v701, 32
    %v708 = vpop.permute.xlu0 %707
    %709 = vrot.lane.b32.xlu0 %v702, 32
    %v710 = vpop.permute.xlu0 %709
    %v713 = vmul.f32 %v685, %v708
    %v714 = vmul.f32 %v700, %v710
    %717 = vrot.lane.b32.xlu0 %v713, 32
    %v718 = vpop.permute.xlu0 %717
    %719 = vrot.lane.b32.xlu0 %v714, 32
    %v720 = vpop.permute.xlu0 %719
    %v723 = vadd.f32 %v703, %v718
    %v724 = vadd.f32 %v704, %v720
    %v725 = vtanh.pop %v723
    %v726 = vtanh.pop %v724
    %729 = vrot.lane.b32.xlu0 %v725, 32
    %v730 = vpop.permute.xlu0 %729
    %731 = vrot.lane.b32.xlu0 %v726, 32
    %v732 = vpop.permute.xlu0 %731
    %v735 = vmul.f32 %v685, %v730
    %v736 = vmul.f32 %v700, %v732
    %v737 = vsel %vm298, %v285, %v267
    %v738 = vsel %vm298, %v288, %v270
    %741 = vrot.lane.b32.xlu0 %v735, 64
    %v742 = vpop.permute.xlu0 %741
    %743 = vrot.lane.b32.xlu0 %v736, 64
    %v744 = vpop.permute.xlu0 %743
    %v745 = vsel %vm301, %v742, 0
    %v747 = vsel %vm301, %v744, 0
    %749 = vmatpush.msra.mxu0 0.0
    %750 = vmatpush.msra.mxu0 0.0
    %751 = vmatpush.msra.mxu0 0.0
    %752 = vmatpush.msra.mxu0 0.0
    %753 = vmatpush.msra.mxu0 0.0
    %754 = vmatpush.msra.mxu0 0.0
    %755 = vmatpush.msra.mxu0 0.0
    %756 = vmatpush.msra.mxu0 0.0
    %757 = vmatpush.msra.mxu0 0.0
    %758 = vmatpush.msra.mxu0 0.0
    %759 = vmatpush.msra.mxu0 0.0
    %760 = vmatpush.msra.mxu0 0.0
    %761 = vmatpush.msra.mxu0 %v55
    %762 = vmatpush.msra.mxu0 %v54
    %763 = vmatpush.msra.mxu0 %v53
    %764 = vmatpush.msra.mxu0 %v52
    %765 = vmatmul.f32.gmra.mxu0 %v745
    %v766 = vpop.f32.mrf.mxu0
    %v767 = vadd.f32 0.0, %v766
    %768 = vmatmul.f32.gmra.mxu0 %v747
    %v769 = vpop.f32.mrf.mxu0
    %v770 = vadd.f32 0.0, %v769
    %771 = vdwg.mxu0
    %v772 = vadd.f32 %v737, %v767
    %v773 = vadd.f32 %v738, %v770
    %v774 = vxor.u32 %v772, 2147483648
    %v775 = vxor.u32 %v773, 2147483648
    %v776 = vmul.f32 %v774, 1.442695
    %v777 = vpow.pop %v776
    %v778 = vmul.f32 %v775, 1.442695
    %v779 = vpow.pop %v778
    %v780 = vadd.f32 %v777, 1.0
    %v781 = vadd.f32 %v779, 1.0
    %v782 = vrcp.pop %v780
    %v783 = vmul.f32 %v780, %v782
    %v784 = vsub.f32 1.0, %v783
    %v785 = vmul.f32 %v782, %v784
    %v786 = vadd.f32 %v782, %v785
    %vm787 = vweird.f32 %v780
    %vm788 = vweird.f32 %v782
    %vm789 = vmor %vm787, %vm788
    %v790 = vsel %vm789, %v782, %v786
    %v791 = vand.u32 2147483647, %v780
    %vm792 = vcmp.eq.f32.partialorder %v791, 8.507059e+37
    %v793 = vand.u32 %v780, 2147483648
    %v794 = vor.u32 1.1754944e-38, %v793
    %v795 = vsel %vm792, %v794, %v790
    %v796 = vmul.f32 1.0, %v795
    %v797 = vrcp.pop %v781
    %v798 = vmul.f32 %v781, %v797
    %v799 = vsub.f32 1.0, %v798
    %v800 = vmul.f32 %v797, %v799
    %v801 = vadd.f32 %v797, %v800
    %vm802 = vweird.f32 %v781
    %vm803 = vweird.f32 %v797
    %vm804 = vmor %vm802, %vm803
    %v805 = vsel %vm804, %v797, %v801
    %v806 = vand.u32 2147483647, %v781
    %vm807 = vcmp.eq.f32.partialorder %v806, 8.507059e+37
    %v808 = vand.u32 %v781, 2147483648
    %v809 = vor.u32 1.1754944e-38, %v808
    %v810 = vsel %vm807, %v809, %v805
    %v811 = vmul.f32 1.0, %v810
    %v812 = vtanh.pop %v772
    %v813 = vtanh.pop %v773
    %v814 = vmul.f32 %v796, %v723
    %v815 = vmul.f32 %v811, %v724
    %818 = vrot.lane.b32.xlu0 %v812, 32
    %v819 = vpop.permute.xlu0 %818
    %820 = vrot.lane.b32.xlu0 %v813, 32
    %v821 = vpop.permute.xlu0 %820
    %v824 = vmul.f32 %v796, %v819
    %v825 = vmul.f32 %v811, %v821
    %828 = vrot.lane.b32.xlu0 %v824, 32
    %v829 = vpop.permute.xlu0 %828
    %830 = vrot.lane.b32.xlu0 %v825, 32
    %v831 = vpop.permute.xlu0 %830
    %v834 = vadd.f32 %v814, %v829
    %v835 = vadd.f32 %v815, %v831
    %v836 = vtanh.pop %v834
    %v837 = vtanh.pop %v835
    %840 = vrot.lane.b32.xlu0 %v836, 32
    %v841 = vpop.permute.xlu0 %840
    %842 = vrot.lane.b32.xlu0 %v837, 32
    %v843 = vpop.permute.xlu0 %842
    %v846 = vmul.f32 %v796, %v841
    %v847 = vmul.f32 %v811, %v843
    %v848 = vsel %vm298, %v291, %v261
    %v849 = vsel %vm298, %v294, %v264
    %852 = vrot.lane.b32.xlu0 %v846, 64
    %v853 = vpop.permute.xlu0 %852
    %854 = vrot.lane.b32.xlu0 %v847, 64
    %v855 = vpop.permute.xlu0 %854
    %v856 = vsel %vm301, %v853, 0
    %v858 = vsel %vm301, %v855, 0
    %860 = vmatpush.msra.mxu0 0.0
    %861 = vmatpush.msra.mxu0 0.0
    %862 = vmatpush.msra.mxu0 0.0
    %863 = vmatpush.msra.mxu0 0.0
    %864 = vmatpush.msra.mxu0 0.0
    %865 = vmatpush.msra.mxu0 0.0
    %866 = vmatpush.msra.mxu0 0.0
    %867 = vmatpush.msra.mxu0 0.0
    %868 = vmatpush.msra.mxu0 0.0
    %869 = vmatpush.msra.mxu0 0.0
    %870 = vmatpush.msra.mxu0 0.0
    %871 = vmatpush.msra.mxu0 0.0
    %872 = vmatpush.msra.mxu0 %v55
    %873 = vmatpush.msra.mxu0 %v54
    %874 = vmatpush.msra.mxu0 %v53
    %875 = vmatpush.msra.mxu0 %v52
    %876 = vmatmul.f32.gmra.mxu0 %v856
    %v877 = vpop.f32.mrf.mxu0
    %v878 = vadd.f32 0.0, %v877
    %879 = vmatmul.f32.gmra.mxu0 %v858
    %v880 = vpop.f32.mrf.mxu0
    %v881 = vadd.f32 0.0, %v880
    %882 = vdwg.mxu0
    %v883 = vadd.f32 %v848, %v878
    %v884 = vadd.f32 %v849, %v881
    %v885 = vxor.u32 %v883, 2147483648
    %v886 = vxor.u32 %v884, 2147483648
    %v887 = vmul.f32 %v885, 1.442695
    %v888 = vpow.pop %v887
    %v889 = vmul.f32 %v886, 1.442695
    %v890 = vpow.pop %v889
    %v891 = vadd.f32 %v888, 1.0
    %v892 = vadd.f32 %v890, 1.0
    %v893 = vrcp.pop %v891
    %v894 = vmul.f32 %v891, %v893
    %v895 = vsub.f32 1.0, %v894
    %v896 = vmul.f32 %v893, %v895
    %v897 = vadd.f32 %v893, %v896
    %vm898 = vweird.f32 %v891
    %vm899 = vweird.f32 %v893
    %vm900 = vmor %vm898, %vm899
    %v901 = vsel %vm900, %v893, %v897
    %v902 = vand.u32 2147483647, %v891
    %vm903 = vcmp.eq.f32.partialorder %v902, 8.507059e+37
    %v904 = vand.u32 %v891, 2147483648
    %v905 = vor.u32 1.1754944e-38, %v904
    %v906 = vsel %vm903, %v905, %v901
    %v907 = vmul.f32 1.0, %v906
    %v908 = vrcp.pop %v892
    %v909 = vmul.f32 %v892, %v908
    %v910 = vsub.f32 1.0, %v909
    %v911 = vmul.f32 %v908, %v910
    %v912 = vadd.f32 %v908, %v911
    %vm913 = vweird.f32 %v892
    %vm914 = vweird.f32 %v908
    %vm915 = vmor %vm913, %vm914
    %v916 = vsel %vm915, %v908, %v912
    %v917 = vand.u32 2147483647, %v892
    %vm918 = vcmp.eq.f32.partialorder %v917, 8.507059e+37
    %v919 = vand.u32 %v892, 2147483648
    %v920 = vor.u32 1.1754944e-38, %v919
    %v921 = vsel %vm918, %v920, %v916
    %v922 = vmul.f32 1.0, %v921
    %v923 = vtanh.pop %v883
    %v924 = vtanh.pop %v884
    %v925 = vmul.f32 %v907, %v834
    %v926 = vmul.f32 %v922, %v835
    %929 = vrot.lane.b32.xlu0 %v923, 32
    %v930 = vpop.permute.xlu0 %929
    %931 = vrot.lane.b32.xlu0 %v924, 32
    %v932 = vpop.permute.xlu0 %931
    %v935 = vmul.f32 %v907, %v930
    %v936 = vmul.f32 %v922, %v932
    %939 = vrot.lane.b32.xlu0 %v935, 32
    %v940 = vpop.permute.xlu0 %939
    %941 = vrot.lane.b32.xlu0 %v936, 32
    %v942 = vpop.permute.xlu0 %941
    %v945 = vadd.f32 %v925, %v940
    %v946 = vadd.f32 %v926, %v942
    %v947 = vtanh.pop %v945
    %v948 = vtanh.pop %v946
    %951 = vrot.lane.b32.xlu0 %v947, 32
    %v952 = vpop.permute.xlu0 %951
    %953 = vrot.lane.b32.xlu0 %v948, 32
    %v954 = vpop.permute.xlu0 %953
    %v957 = vmul.f32 %v907, %v952
    %v958 = vmul.f32 %v922, %v954
    %v959 = vld [vmem:[%s0 + $0x60] sm:$0xff]
    %v960 = vld [vmem:[%s0 + $0x68] sm:$0xff]
    %961 = vset.pattern.permute.xlu0 0
    %962 = vperm.xlu0 %961, %v959
    %v963 = vpop.permute.xlu0 %962
    %964 = vset.pattern.permute.xlu0 0
    %965 = vperm.xlu0 %964, %v960
    %v966 = vpop.permute.xlu0 %965
    %vm967 = vcmp.eq.s32.totalorder %v963, %v133
    %vm968 = vcmp.eq.s32.totalorder %v966, %v133
    %v969 = vsel %vm967, 1, 0
    %v970 = vsel %vm968, 1, 0
    %v971 = vcvt.s32.f32 %v969
    %v972 = vcvt.s32.f32 %v970
    %975 = vrot.lane.b32.xlu0 %v957, 64
    %v976 = vpop.permute.xlu0 %975
    %977 = vrot.lane.b32.xlu0 %v958, 64
    %v978 = vpop.permute.xlu0 %977
    %vm981 = vcmask 130048
    %v983 = vsel %vm981, %v971, 0
    %v986 = vsel %vm981, %v972, 0
    %988 = vmatpush.msra.mxu0 0.0
    %989 = vmatpush.msra.mxu0 0.0
    %990 = vmatpush.msra.mxu0 0.0
    %991 = vmatpush.msra.mxu0 0.0
    %992 = vmatpush.msra.mxu0 0.0
    %993 = vmatpush.msra.mxu0 0.0
    %994 = vmatpush.msra.mxu0 0.0
    %995 = vmatpush.msra.mxu0 0.0
    %996 = vmatpush.msra.mxu0 0.0
    %997 = vmatpush.msra.mxu0 0.0
    %998 = vmatpush.msra.mxu0 0.0
    %999 = vmatpush.msra.mxu0 0.0
    %1000 = vmatpush.msra.mxu0 0.0
    %1001 = vmatpush.msra.mxu0 0.0
    %1002 = vmatpush.msra.mxu0 %v978
    %1003 = vmatpush.msra.mxu0 %v976
    %1004 = vmatmul.f32.gmra.mxu0 %v983
    %v1005 = vpop.f32.mrf.mxu0
    %v1006 = vadd.f32 0.0, %v1005
    %1007 = vmatmul.f32.gmra.mxu0 %v986
    %v1008 = vpop.f32.mrf.mxu0
    %v1009 = vadd.f32 0.0, %v1008
    %1010 = vdwg.mxu0
    %v1011 = vld [vmem:[%s1] sm:$0xff]
    %v1012 = vld [vmem:[%s1 + $0x8] sm:$0xff]
    %1015 = vrot.lane.b32.xlu0 %v1006, 32
    %v1016 = vpop.permute.xlu0 %1015
    %1017 = vrot.lane.b32.xlu0 %v1009, 32
    %v1018 = vpop.permute.xlu0 %1017
    %v1021 = vsel %vm301, %v1011, %v1016
    %v1022 = vsel %vm301, %v1012, %v1018
    %v1024 = vperm.slane %v100, 0
    %v1025 = vperm.slane %v100, 1
    %vm1028 = vcmask 523264
    %v1030 = vsel %vm1028, %v1021, 0
    %v1033 = vsel %vm1028, %v1022, 0
    %1035 = vmatpush.msra.mxu0 0.0
    %1036 = vmatpush.msra.mxu0 0.0
    %1037 = vmatpush.msra.mxu0 0.0
    %1038 = vmatpush.msra.mxu0 0.0
    %1039 = vmatpush.msra.mxu0 0.0
    %1040 = vmatpush.msra.mxu0 0.0
    %1041 = vmatpush.msra.mxu0 0.0
    %1042 = vmatpush.msra.mxu0 0.0
    %1043 = vmatpush.msra.mxu0 %v97
    %1044 = vmatpush.msra.mxu0 %v95
    %1045 = vmatpush.msra.mxu0 %v93
    %1046 = vmatpush.msra.mxu0 %v91
    %1047 = vmatpush.msra.mxu0 %v89
    %1048 = vmatpush.msra.mxu0 %v87
    %1049 = vmatpush.msra.mxu0 %v85
    %1050 = vmatpush.msra.mxu0 %v83
    %1051 = vmatmul.f32.gmra.mxu0 %v1030
    %v1052 = vpop.f32.mrf.mxu0
    %v1053 = vadd.f32 %v1024, %v1052
    %1054 = vmatmul.f32.gmra.mxu0 %v1033
    %v1055 = vpop.f32.mrf.mxu0
    %v1056 = vadd.f32 %v1024, %v1055
    %1057 = vdwg.mxu0
    %1058 = vmatpush.msra.mxu0 0.0
    %1059 = vmatpush.msra.mxu0 0.0
    %1060 = vmatpush.msra.mxu0 0.0
    %1061 = vmatpush.msra.mxu0 0.0
    %1062 = vmatpush.msra.mxu0 0.0
    %1063 = vmatpush.msra.mxu0 0.0
    %1064 = vmatpush.msra.mxu0 0.0
    %1065 = vmatpush.msra.mxu0 0.0
    %1066 = vmatpush.msra.mxu0 %v98
    %1067 = vmatpush.msra.mxu0 %v96
    %1068 = vmatpush.msra.mxu0 %v94
    %1069 = vmatpush.msra.mxu0 %v92
    %1070 = vmatpush.msra.mxu0 %v90
    %1071 = vmatpush.msra.mxu0 %v88
    %1072 = vmatpush.msra.mxu0 %v86
    %1073 = vmatpush.msra.mxu0 %v84
    %1074 = vmatmul.f32.gmra.mxu0 %v1030
    %v1075 = vpop.f32.mrf.mxu0
    %v1076 = vadd.f32 %v1025, %v1075
    %1077 = vmatmul.f32.gmra.mxu0 %v1033
    %v1078 = vpop.f32.mrf.mxu0
    %v1079 = vadd.f32 %v1025, %v1078
    %1080 = vdwg.mxu0
    %v1081 = vsel %vm119, 1, 0
    %v1082 = vperm.slane %v1081, 0
    %v1083 = vperm.slane %v1081, 1
    %vm1084 = vcmp.eq.s32.totalorder %v1082, 1
    %vm1085 = vcmp.eq.s32.totalorder %v1083, 1
    %v1088 = vrot.slane %v1056, 6
    %v1089 = vrot.slane %v1079, 6
    %v1092 = vsel %vm1084, %v1053, %v1088
    %v1093 = vsel %vm1085, %v1076, %v1089
    %v1094 = vsel %vm1028, 0.0, 0
    %1096 = vmatpush.msra.mxu0 0.0
    %1097 = vmatpush.msra.mxu0 0.0
    %1098 = vmatpush.msra.mxu0 0.0
    %1099 = vmatpush.msra.mxu0 0.0
    %1100 = vmatpush.msra.mxu0 0.0
    %1101 = vmatpush.msra.mxu0 0.0
    %1102 = vmatpush.msra.mxu0 0.0
    %1103 = vmatpush.msra.mxu0 0.0
    %1104 = vmatpush.msra.mxu0 %v115
    %1105 = vmatpush.msra.mxu0 %v113
    %1106 = vmatpush.msra.mxu0 %v111
    %1107 = vmatpush.msra.mxu0 %v109
    %1108 = vmatpush.msra.mxu0 %v107
    %1109 = vmatpush.msra.mxu0 %v105
    %1110 = vmatpush.msra.mxu0 %v103
    %1111 = vmatpush.msra.mxu0 %v101
    %1112 = vmatmul.f32.gmra.mxu0 %v1094
    %v1113 = vpop.f32.mrf.mxu0
    %v1114 = vadd.f32 0.0, %v1113
    %1115 = vdwg.mxu0
    %1116 = vmatpush.msra.mxu0 0.0
    %1117 = vmatpush.msra.mxu0 0.0
    %1118 = vmatpush.msra.mxu0 0.0
    %1119 = vmatpush.msra.mxu0 0.0
    %1120 = vmatpush.msra.mxu0 0.0
    %1121 = vmatpush.msra.mxu0 0.0
    %1122 = vmatpush.msra.mxu0 0.0
    %1123 = vmatpush.msra.mxu0 0.0
    %1124 = vmatpush.msra.mxu0 %v116
    %1125 = vmatpush.msra.mxu0 %v114
    %1126 = vmatpush.msra.mxu0 %v112
    %1127 = vmatpush.msra.mxu0 %v110
    %1128 = vmatpush.msra.mxu0 %v108
    %1129 = vmatpush.msra.mxu0 %v106
    %1130 = vmatpush.msra.mxu0 %v104
    %1131 = vmatpush.msra.mxu0 %v102
    %1132 = vmatmul.f32.gmra.mxu0 %v1094
    %v1133 = vpop.f32.mrf.mxu0
    %v1134 = vadd.f32 0.0, %v1133
    %1135 = vdwg.mxu0
    %v1136 = vadd.f32 %v1092, %v1114
    %v1137 = vadd.f32 %v1093, %v1134
    %v1138 = vxor.u32 %v1136, 2147483648
    %v1139 = vxor.u32 %v1137, 2147483648
    %v1140 = vmul.f32 %v1138, 1.442695
    %v1141 = vpow.pop %v1140
    %v1142 = vmul.f32 %v1139, 1.442695
    %v1143 = vpow.pop %v1142
    %v1144 = vadd.f32 %v1141, 1.0
    %v1145 = vadd.f32 %v1143, 1.0
    %v1146 = vrcp.pop %v1144
    %v1147 = vmul.f32 %v1144, %v1146
    %v1148 = vsub.f32 1.0, %v1147
    %v1149 = vmul.f32 %v1146, %v1148
    %v1150 = vadd.f32 %v1146, %v1149
    %vm1151 = vweird.f32 %v1144
    %vm1152 = vweird.f32 %v1146
    %vm1153 = vmor %vm1151, %vm1152
    %v1154 = vsel %vm1153, %v1146, %v1150
    %v1155 = vand.u32 2147483647, %v1144
    %vm1156 = vcmp.eq.f32.partialorder %v1155, 8.507059e+37
    %v1157 = vand.u32 %v1144, 2147483648
    %v1158 = vor.u32 1.1754944e-38, %v1157
    %v1159 = vsel %vm1156, %v1158, %v1154
    %v1160 = vmul.f32 1.0, %v1159
    %v1161 = vrcp.pop %v1145
    %v1162 = vmul.f32 %v1145, %v1161
    %v1163 = vsub.f32 1.0, %v1162
    %v1164 = vmul.f32 %v1161, %v1163
    %v1165 = vadd.f32 %v1161, %v1164
    %vm1166 = vweird.f32 %v1145
    %vm1167 = vweird.f32 %v1161
    %vm1168 = vmor %vm1166, %vm1167
    %v1169 = vsel %vm1168, %v1161, %v1165
    %v1170 = vand.u32 2147483647, %v1145
    %vm1171 = vcmp.eq.f32.partialorder %v1170, 8.507059e+37
    %v1172 = vand.u32 %v1145, 2147483648
    %v1173 = vor.u32 1.1754944e-38, %v1172
    %v1174 = vsel %vm1171, %v1173, %v1169
    %v1175 = vmul.f32 1.0, %v1174
    %v1176 = vtanh.pop %v1137
    %v1177 = vmul.f32 %v1160, 0.0
    %1179 = vrot.lane.b32.xlu0 %v1176, 64
    %v1180 = vpop.permute.xlu0 %1179
    %v1182 = vmul.f32 %v1160, %v1180
    %1184 = vrot.lane.b32.xlu0 %v1182, 64
    %v1185 = vpop.permute.xlu0 %1184
    %v1187 = vadd.f32 %v1177, %v1185
    %v1188 = vtanh.pop %v1187
    %1190 = vrot.lane.b32.xlu0 %v1188, 64
    %v1191 = vpop.permute.xlu0 %1190
    %v1193 = vmul.f32 %v1175, %v1191
    %v1194 = vadd.f32 %v1193, 0.0
    %v1195 = vrot.slane %v1056, 2
    %v1196 = vrot.slane %v1079, 2
    %v1199 = vsel %vm1084, %v1053, %v1195
    %v1200 = vsel %vm1085, %v1076, %v1196
    %v1202 = vsel %vm1028, %v1193, 0
    %1204 = vmatpush.msra.mxu0 0.0
    %1205 = vmatpush.msra.mxu0 0.0
    %1206 = vmatpush.msra.mxu0 0.0
    %1207 = vmatpush.msra.mxu0 0.0
    %1208 = vmatpush.msra.mxu0 0.0
    %1209 = vmatpush.msra.mxu0 0.0
    %1210 = vmatpush.msra.mxu0 0.0
    %1211 = vmatpush.msra.mxu0 0.0
    %1212 = vmatpush.msra.mxu0 %v115
    %1213 = vmatpush.msra.mxu0 %v113
    %1214 = vmatpush.msra.mxu0 %v111
    %1215 = vmatpush.msra.mxu0 %v109
    %1216 = vmatpush.msra.mxu0 %v107
    %1217 = vmatpush.msra.mxu0 %v105
    %1218 = vmatpush.msra.mxu0 %v103
    %1219 = vmatpush.msra.mxu0 %v101
    %1220 = vmatmul.f32.gmra.mxu0 %v1202
    %v1221 = vpop.f32.mrf.mxu0
    %v1222 = vadd.f32 0.0, %v1221
    %1223 = vdwg.mxu0
    %1224 = vmatpush.msra.mxu0 0.0
    %1225 = vmatpush.msra.mxu0 0.0
    %1226 = vmatpush.msra.mxu0 0.0
    %1227 = vmatpush.msra.mxu0 0.0
    %1228 = vmatpush.msra.mxu0 0.0
    %1229 = vmatpush.msra.mxu0 0.0
    %1230 = vmatpush.msra.mxu0 0.0
    %1231 = vmatpush.msra.mxu0 0.0
    %1232 = vmatpush.msra.mxu0 %v116
    %1233 = vmatpush.msra.mxu0 %v114
    %1234 = vmatpush.msra.mxu0 %v112
    %1235 = vmatpush.msra.mxu0 %v110
    %1236 = vmatpush.msra.mxu0 %v108
    %1237 = vmatpush.msra.mxu0 %v106
    %1238 = vmatpush.msra.mxu0 %v104
    %1239 = vmatpush.msra.mxu0 %v102
    %1240 = vmatmul.f32.gmra.mxu0 %v1202
    %v1241 = vpop.f32.mrf.mxu0
    %v1242 = vadd.f32 0.0, %v1241
    %1243 = vdwg.mxu0
    %v1246 = vrot.slane %v1222, 6
    %v1247 = vrot.slane %v1242, 6
    %v1250 = vadd.f32 %v1199, %v1246
    %v1251 = vadd.f32 %v1200, %v1247
    %v1252 = vxor.u32 %v1250, 2147483648
    %v1253 = vxor.u32 %v1251, 2147483648
    %v1254 = vmul.f32 %v1252, 1.442695
    %v1255 = vpow.pop %v1254
    %v1256 = vmul.f32 %v1253, 1.442695
    %v1257 = vpow.pop %v1256
    %v1258 = vadd.f32 %v1255, 1.0
    %v1259 = vadd.f32 %v1257, 1.0
    %v1260 = vrcp.pop %v1258
    %v1261 = vmul.f32 %v1258, %v1260
    %v1262 = vsub.f32 1.0, %v1261
    %v1263 = vmul.f32 %v1260, %v1262
    %v1264 = vadd.f32 %v1260, %v1263
    %vm1265 = vweird.f32 %v1258
    %vm1266 = vweird.f32 %v1260
    %vm1267 = vmor %vm1265, %vm1266
    %v1268 = vsel %vm1267, %v1260, %v1264
    %v1269 = vand.u32 2147483647, %v1258
    %vm1270 = vcmp.eq.f32.partialorder %v1269, 8.507059e+37
    %v1271 = vand.u32 %v1258, 2147483648
    %v1272 = vor.u32 1.1754944e-38, %v1271
    %v1273 = vsel %vm1270, %v1272, %v1268
    %v1274 = vmul.f32 1.0, %v1273
    %v1275 = vrcp.pop %v1259
    %v1276 = vmul.f32 %v1259, %v1275
    %v1277 = vsub.f32 1.0, %v1276
    %v1278 = vmul.f32 %v1275, %v1277
    %v1279 = vadd.f32 %v1275, %v1278
    %vm1280 = vweird.f32 %v1259
    %vm1281 = vweird.f32 %v1275
    %vm1282 = vmor %vm1280, %vm1281
    %v1283 = vsel %vm1282, %v1275, %v1279
    %v1284 = vand.u32 2147483647, %v1259
    %vm1285 = vcmp.eq.f32.partialorder %v1284, 8.507059e+37
    %v1286 = vand.u32 %v1259, 2147483648
    %v1287 = vor.u32 1.1754944e-38, %v1286
    %v1288 = vsel %vm1285, %v1287, %v1283
    %v1289 = vmul.f32 1.0, %v1288
    %v1290 = vtanh.pop %v1251
    %v1292 = vrot.slane %v1187, 6
    %v1294 = vmul.f32 %v1274, %v1292
    %1296 = vrot.lane.b32.xlu0 %v1290, 64
    %v1297 = vpop.permute.xlu0 %1296
    %v1299 = vmul.f32 %v1274, %v1297
    %1301 = vrot.lane.b32.xlu0 %v1299, 64
    %v1302 = vpop.permute.xlu0 %1301
    %v1304 = vadd.f32 %v1294, %v1302
    %v1305 = vtanh.pop %v1304
    %1307 = vrot.lane.b32.xlu0 %v1305, 64
    %v1308 = vpop.permute.xlu0 %1307
    %v1310 = vmul.f32 %v1289, %v1308
    %v1312 = vrot.slane %v1310, 2
    %v1314 = vadd.f32 %v1194, %v1312
    %v1315 = vsel %vm1028, %v1312, 0
    %1317 = vmatpush.msra.mxu0 0.0
    %1318 = vmatpush.msra.mxu0 0.0
    %1319 = vmatpush.msra.mxu0 0.0
    %1320 = vmatpush.msra.mxu0 0.0
    %1321 = vmatpush.msra.mxu0 0.0
    %1322 = vmatpush.msra.mxu0 0.0
    %1323 = vmatpush.msra.mxu0 0.0
    %1324 = vmatpush.msra.mxu0 0.0
    %1325 = vmatpush.msra.mxu0 %v115
    %1326 = vmatpush.msra.mxu0 %v113
    %1327 = vmatpush.msra.mxu0 %v111
    %1328 = vmatpush.msra.mxu0 %v109
    %1329 = vmatpush.msra.mxu0 %v107
    %1330 = vmatpush.msra.mxu0 %v105
    %1331 = vmatpush.msra.mxu0 %v103
    %1332 = vmatpush.msra.mxu0 %v101
    %1333 = vmatmul.f32.gmra.mxu0 %v1315
    %v1334 = vpop.f32.mrf.mxu0
    %v1335 = vadd.f32 0.0, %v1334
    %1336 = vdwg.mxu0
    %1337 = vmatpush.msra.mxu0 0.0
    %1338 = vmatpush.msra.mxu0 0.0
    %1339 = vmatpush.msra.mxu0 0.0
    %1340 = vmatpush.msra.mxu0 0.0
    %1341 = vmatpush.msra.mxu0 0.0
    %1342 = vmatpush.msra.mxu0 0.0
    %1343 = vmatpush.msra.mxu0 0.0
    %1344 = vmatpush.msra.mxu0 0.0
    %1345 = vmatpush.msra.mxu0 %v116
    %1346 = vmatpush.msra.mxu0 %v114
    %1347 = vmatpush.msra.mxu0 %v112
    %1348 = vmatpush.msra.mxu0 %v110
    %1349 = vmatpush.msra.mxu0 %v108
    %1350 = vmatpush.msra.mxu0 %v106
    %1351 = vmatpush.msra.mxu0 %v104
    %1352 = vmatpush.msra.mxu0 %v102
    %1353 = vmatmul.f32.gmra.mxu0 %v1315
    %v1354 = vpop.f32.mrf.mxu0
    %v1355 = vadd.f32 0.0, %v1354
    %1356 = vdwg.mxu0
    %v1359 = vrot.slane %v1335, 4
    %v1360 = vrot.slane %v1355, 4
    %v1363 = vadd.f32 %v1092, %v1359
    %v1364 = vadd.f32 %v1093, %v1360
    %v1365 = vxor.u32 %v1363, 2147483648
    %v1366 = vxor.u32 %v1364, 2147483648
    %v1367 = vmul.f32 %v1365, 1.442695
    %v1368 = vpow.pop %v1367
    %v1369 = vmul.f32 %v1366, 1.442695
    %v1370 = vpow.pop %v1369
    %v1371 = vadd.f32 %v1368, 1.0
    %v1372 = vadd.f32 %v1370, 1.0
    %v1373 = vrcp.pop %v1371
    %v1374 = vmul.f32 %v1371, %v1373
    %v1375 = vsub.f32 1.0, %v1374
    %v1376 = vmul.f32 %v1373, %v1375
    %v1377 = vadd.f32 %v1373, %v1376
    %vm1378 = vweird.f32 %v1371
    %vm1379 = vweird.f32 %v1373
    %vm1380 = vmor %vm1378, %vm1379
    %v1381 = vsel %vm1380, %v1373, %v1377
    %v1382 = vand.u32 2147483647, %v1371
    %vm1383 = vcmp.eq.f32.partialorder %v1382, 8.507059e+37
    %v1384 = vand.u32 %v1371, 2147483648
    %v1385 = vor.u32 1.1754944e-38, %v1384
    %v1386 = vsel %vm1383, %v1385, %v1381
    %v1387 = vmul.f32 1.0, %v1386
    %v1388 = vrcp.pop %v1372
    %v1389 = vmul.f32 %v1372, %v1388
    %v1390 = vsub.f32 1.0, %v1389
    %v1391 = vmul.f32 %v1388, %v1390
    %v1392 = vadd.f32 %v1388, %v1391
    %vm1393 = vweird.f32 %v1372
    %vm1394 = vweird.f32 %v1388
    %vm1395 = vmor %vm1393, %vm1394
    %v1396 = vsel %vm1395, %v1388, %v1392
    %v1397 = vand.u32 2147483647, %v1372
    %vm1398 = vcmp.eq.f32.partialorder %v1397, 8.507059e+37
    %v1399 = vand.u32 %v1372, 2147483648
    %v1400 = vor.u32 1.1754944e-38, %v1399
    %v1401 = vsel %vm1398, %v1400, %v1396
    %v1402 = vmul.f32 1.0, %v1401
    %v1403 = vtanh.pop %v1364
    %v1405 = vrot.slane %v1304, 6
    %v1407 = vmul.f32 %v1387, %v1405
    %1409 = vrot.lane.b32.xlu0 %v1403, 64
    %v1410 = vpop.permute.xlu0 %1409
    %v1412 = vmul.f32 %v1387, %v1410
    %1414 = vrot.lane.b32.xlu0 %v1412, 64
    %v1415 = vpop.permute.xlu0 %1414
    %v1417 = vadd.f32 %v1407, %v1415
    %v1418 = vtanh.pop %v1417
    %1420 = vrot.lane.b32.xlu0 %v1418, 64
    %v1421 = vpop.permute.xlu0 %1420
    %v1423 = vmul.f32 %v1402, %v1421
    %v1425 = vrot.slane %v1423, 4
    %v1427 = vadd.f32 %v1314, %v1425
    %v1428 = vsel %vm1028, %v1425, 0
    %1430 = vmatpush.msra.mxu0 0.0
    %1431 = vmatpush.msra.mxu0 0.0
    %1432 = vmatpush.msra.mxu0 0.0
    %1433 = vmatpush.msra.mxu0 0.0
    %1434 = vmatpush.msra.mxu0 0.0
    %1435 = vmatpush.msra.mxu0 0.0
    %1436 = vmatpush.msra.mxu0 0.0
    %1437 = vmatpush.msra.mxu0 0.0
    %1438 = vmatpush.msra.mxu0 %v115
    %1439 = vmatpush.msra.mxu0 %v113
    %1440 = vmatpush.msra.mxu0 %v111
    %1441 = vmatpush.msra.mxu0 %v109
    %1442 = vmatpush.msra.mxu0 %v107
    %1443 = vmatpush.msra.mxu0 %v105
    %1444 = vmatpush.msra.mxu0 %v103
    %1445 = vmatpush.msra.mxu0 %v101
    %1446 = vmatmul.f32.gmra.mxu0 %v1428
    %v1447 = vpop.f32.mrf.mxu0
    %v1448 = vadd.f32 0.0, %v1447
    %1449 = vdwg.mxu0
    %1450 = vmatpush.msra.mxu0 0.0
    %1451 = vmatpush.msra.mxu0 0.0
    %1452 = vmatpush.msra.mxu0 0.0
    %1453 = vmatpush.msra.mxu0 0.0
    %1454 = vmatpush.msra.mxu0 0.0
    %1455 = vmatpush.msra.mxu0 0.0
    %1456 = vmatpush.msra.mxu0 0.0
    %1457 = vmatpush.msra.mxu0 0.0
    %1458 = vmatpush.msra.mxu0 %v116
    %1459 = vmatpush.msra.mxu0 %v114
    %1460 = vmatpush.msra.mxu0 %v112
    %1461 = vmatpush.msra.mxu0 %v110
    %1462 = vmatpush.msra.mxu0 %v108
    %1463 = vmatpush.msra.mxu0 %v106
    %1464 = vmatpush.msra.mxu0 %v104
    %1465 = vmatpush.msra.mxu0 %v102
    %1466 = vmatmul.f32.gmra.mxu0 %v1428
    %v1467 = vpop.f32.mrf.mxu0
    %v1468 = vadd.f32 0.0, %v1467
    %1469 = vdwg.mxu0
    %v1472 = vrot.slane %v1448, 2
    %v1473 = vrot.slane %v1468, 2
    %v1476 = vadd.f32 %v1199, %v1472
    %v1477 = vadd.f32 %v1200, %v1473
    %v1478 = vxor.u32 %v1476, 2147483648
    %v1479 = vxor.u32 %v1477, 2147483648
    %v1480 = vmul.f32 %v1478, 1.442695
    %v1481 = vpow.pop %v1480
    %v1482 = vmul.f32 %v1479, 1.442695
    %v1483 = vpow.pop %v1482
    %v1484 = vadd.f32 %v1481, 1.0
    %v1485 = vadd.f32 %v1483, 1.0
    %v1486 = vrcp.pop %v1484
    %v1487 = vmul.f32 %v1484, %v1486
    %v1488 = vsub.f32 1.0, %v1487
    %v1489 = vmul.f32 %v1486, %v1488
    %v1490 = vadd.f32 %v1486, %v1489
    %vm1491 = vweird.f32 %v1484
    %vm1492 = vweird.f32 %v1486
    %vm1493 = vmor %vm1491, %vm1492
    %v1494 = vsel %vm1493, %v1486, %v1490
    %v1495 = vand.u32 2147483647, %v1484
    %vm1496 = vcmp.eq.f32.partialorder %v1495, 8.507059e+37
    %v1497 = vand.u32 %v1484, 2147483648
    %v1498 = vor.u32 1.1754944e-38, %v1497
    %v1499 = vsel %vm1496, %v1498, %v1494
    %v1500 = vmul.f32 1.0, %v1499
    %v1501 = vrcp.pop %v1485
    %v1502 = vmul.f32 %v1485, %v1501
    %v1503 = vsub.f32 1.0, %v1502
    %v1504 = vmul.f32 %v1501, %v1503
    %v1505 = vadd.f32 %v1501, %v1504
    %vm1506 = vweird.f32 %v1485
    %vm1507 = vweird.f32 %v1501
    %vm1508 = vmor %vm1506, %vm1507
    %v1509 = vsel %vm1508, %v1501, %v1505
    %v1510 = vand.u32 2147483647, %v1485
    %vm1511 = vcmp.eq.f32.partialorder %v1510, 8.507059e+37
    %v1512 = vand.u32 %v1485, 2147483648
    %v1513 = vor.u32 1.1754944e-38, %v1512
    %v1514 = vsel %vm1511, %v1513, %v1509
    %v1515 = vmul.f32 1.0, %v1514
    %v1516 = vtanh.pop %v1477
    %v1518 = vrot.slane %v1417, 6
    %v1520 = vmul.f32 %v1500, %v1518
    %1522 = vrot.lane.b32.xlu0 %v1516, 64
    %v1523 = vpop.permute.xlu0 %1522
    %v1525 = vmul.f32 %v1500, %v1523
    %1527 = vrot.lane.b32.xlu0 %v1525, 64
    %v1528 = vpop.permute.xlu0 %1527
    %v1530 = vadd.f32 %v1520, %v1528
    %v1531 = vtanh.pop %v1530
    %1533 = vrot.lane.b32.xlu0 %v1531, 64
    %v1534 = vpop.permute.xlu0 %1533
    %v1536 = vmul.f32 %v1515, %v1534
    %v1538 = vrot.slane %v1536, 6
    %v1540 = vadd.f32 %v1427, %v1538
    %v1543 = vrot.slane %v1053, 6
    %v1544 = vrot.slane %v1076, 6
    %v1547 = vsel %vm1084, %v1056, %v1543
    %v1548 = vsel %vm1085, %v1079, %v1544
    %v1549 = vsel %vm1028, %v1538, 0
    %1551 = vmatpush.msra.mxu0 0.0
    %1552 = vmatpush.msra.mxu0 0.0
    %1553 = vmatpush.msra.mxu0 0.0
    %1554 = vmatpush.msra.mxu0 0.0
    %1555 = vmatpush.msra.mxu0 0.0
    %1556 = vmatpush.msra.mxu0 0.0
    %1557 = vmatpush.msra.mxu0 0.0
    %1558 = vmatpush.msra.mxu0 0.0
    %1559 = vmatpush.msra.mxu0 %v115
    %1560 = vmatpush.msra.mxu0 %v113
    %1561 = vmatpush.msra.mxu0 %v111
    %1562 = vmatpush.msra.mxu0 %v109
    %1563 = vmatpush.msra.mxu0 %v107
    %1564 = vmatpush.msra.mxu0 %v105
    %1565 = vmatpush.msra.mxu0 %v103
    %1566 = vmatpush.msra.mxu0 %v101
    %1567 = vmatmul.f32.gmra.mxu0 %v1549
    %v1568 = vpop.f32.mrf.mxu0
    %v1569 = vadd.f32 0.0, %v1568
    %1570 = vdwg.mxu0
    %1571 = vmatpush.msra.mxu0 0.0
    %1572 = vmatpush.msra.mxu0 0.0
    %1573 = vmatpush.msra.mxu0 0.0
    %1574 = vmatpush.msra.mxu0 0.0
    %1575 = vmatpush.msra.mxu0 0.0
    %1576 = vmatpush.msra.mxu0 0.0
    %1577 = vmatpush.msra.mxu0 0.0
    %1578 = vmatpush.msra.mxu0 0.0
    %1579 = vmatpush.msra.mxu0 %v116
    %1580 = vmatpush.msra.mxu0 %v114
    %1581 = vmatpush.msra.mxu0 %v112
    %1582 = vmatpush.msra.mxu0 %v110
    %1583 = vmatpush.msra.mxu0 %v108
    %1584 = vmatpush.msra.mxu0 %v106
    %1585 = vmatpush.msra.mxu0 %v104
    %1586 = vmatpush.msra.mxu0 %v102
    %1587 = vmatmul.f32.gmra.mxu0 %v1549
    %v1588 = vpop.f32.mrf.mxu0
    %v1589 = vadd.f32 0.0, %v1588
    %1590 = vdwg.mxu0
    %v1591 = vadd.f32 %v1547, %v1569
    %v1592 = vadd.f32 %v1548, %v1589
    %v1593 = vxor.u32 %v1591, 2147483648
    %v1594 = vxor.u32 %v1592, 2147483648
    %v1595 = vmul.f32 %v1593, 1.442695
    %v1596 = vpow.pop %v1595
    %v1597 = vmul.f32 %v1594, 1.442695
    %v1598 = vpow.pop %v1597
    %v1599 = vadd.f32 %v1596, 1.0
    %v1600 = vadd.f32 %v1598, 1.0
    %v1601 = vrcp.pop %v1599
    %v1602 = vmul.f32 %v1599, %v1601
    %v1603 = vsub.f32 1.0, %v1602
    %v1604 = vmul.f32 %v1601, %v1603
    %v1605 = vadd.f32 %v1601, %v1604
    %vm1606 = vweird.f32 %v1599
    %vm1607 = vweird.f32 %v1601
    %vm1608 = vmor %vm1606, %vm1607
    %v1609 = vsel %vm1608, %v1601, %v1605
    %v1610 = vand.u32 2147483647, %v1599
    %vm1611 = vcmp.eq.f32.partialorder %v1610, 8.507059e+37
    %v1612 = vand.u32 %v1599, 2147483648
    %v1613 = vor.u32 1.1754944e-38, %v1612
    %v1614 = vsel %vm1611, %v1613, %v1609
    %v1615 = vmul.f32 1.0, %v1614
    %v1616 = vrcp.pop %v1600
    %v1617 = vmul.f32 %v1600, %v1616
    %v1618 = vsub.f32 1.0, %v1617
    %v1619 = vmul.f32 %v1616, %v1618
    %v1620 = vadd.f32 %v1616, %v1619
    %vm1621 = vweird.f32 %v1600
    %vm1622 = vweird.f32 %v1616
    %vm1623 = vmor %vm1621, %vm1622
    %v1624 = vsel %vm1623, %v1616, %v1620
    %v1625 = vand.u32 2147483647, %v1600
    %vm1626 = vcmp.eq.f32.partialorder %v1625, 8.507059e+37
    %v1627 = vand.u32 %v1600, 2147483648
    %v1628 = vor.u32 1.1754944e-38, %v1627
    %v1629 = vsel %vm1626, %v1628, %v1624
    %v1630 = vmul.f32 1.0, %v1629
    %v1631 = vtanh.pop %v1592
    %v1633 = vrot.slane %v1530, 6
    %v1635 = vmul.f32 %v1615, %v1633
    %1637 = vrot.lane.b32.xlu0 %v1631, 64
    %v1638 = vpop.permute.xlu0 %1637
    %v1640 = vmul.f32 %v1615, %v1638
    %1642 = vrot.lane.b32.xlu0 %v1640, 64
    %v1643 = vpop.permute.xlu0 %1642
    %v1645 = vadd.f32 %v1635, %v1643
    %v1646 = vtanh.pop %v1645
    %1648 = vrot.lane.b32.xlu0 %v1646, 64
    %v1649 = vpop.permute.xlu0 %1648
    %v1651 = vmul.f32 %v1630, %v1649
    %v1652 = vadd.f32 %v1540, %v1651
    %v1653 = vrot.slane %v1053, 2
    %v1654 = vrot.slane %v1076, 2
    %v1657 = vsel %vm1084, %v1056, %v1653
    %v1658 = vsel %vm1085, %v1079, %v1654
    %v1660 = vsel %vm1028, %v1651, 0
    %1662 = vmatpush.msra.mxu0 0.0
    %1663 = vmatpush.msra.mxu0 0.0
    %1664 = vmatpush.msra.mxu0 0.0
    %1665 = vmatpush.msra.mxu0 0.0
    %1666 = vmatpush.msra.mxu0 0.0
    %1667 = vmatpush.msra.mxu0 0.0
    %1668 = vmatpush.msra.mxu0 0.0
    %1669 = vmatpush.msra.mxu0 0.0
    %1670 = vmatpush.msra.mxu0 %v115
    %1671 = vmatpush.msra.mxu0 %v113
    %1672 = vmatpush.msra.mxu0 %v111
    %1673 = vmatpush.msra.mxu0 %v109
    %1674 = vmatpush.msra.mxu0 %v107
    %1675 = vmatpush.msra.mxu0 %v105
    %1676 = vmatpush.msra.mxu0 %v103
    %1677 = vmatpush.msra.mxu0 %v101
    %1678 = vmatmul.f32.gmra.mxu0 %v1660
    %v1679 = vpop.f32.mrf.mxu0
    %v1680 = vadd.f32 0.0, %v1679
    %1681 = vdwg.mxu0
    %1682 = vmatpush.msra.mxu0 0.0
    %1683 = vmatpush.msra.mxu0 0.0
    %1684 = vmatpush.msra.mxu0 0.0
    %1685 = vmatpush.msra.mxu0 0.0
    %1686 = vmatpush.msra.mxu0 0.0
    %1687 = vmatpush.msra.mxu0 0.0
    %1688 = vmatpush.msra.mxu0 0.0
    %1689 = vmatpush.msra.mxu0 0.0
    %1690 = vmatpush.msra.mxu0 %v116
    %1691 = vmatpush.msra.mxu0 %v114
    %1692 = vmatpush.msra.mxu0 %v112
    %1693 = vmatpush.msra.mxu0 %v110
    %1694 = vmatpush.msra.mxu0 %v108
    %1695 = vmatpush.msra.mxu0 %v106
    %1696 = vmatpush.msra.mxu0 %v104
    %1697 = vmatpush.msra.mxu0 %v102
    %1698 = vmatmul.f32.gmra.mxu0 %v1660
    %v1699 = vpop.f32.mrf.mxu0
    %v1700 = vadd.f32 0.0, %v1699
    %1701 = vdwg.mxu0
    %v1704 = vrot.slane %v1680, 6
    %v1705 = vrot.slane %v1700, 6
    %v1708 = vadd.f32 %v1657, %v1704
    %v1709 = vadd.f32 %v1658, %v1705
    %v1710 = vxor.u32 %v1708, 2147483648
    %v1711 = vxor.u32 %v1709, 2147483648
    %v1712 = vmul.f32 %v1710, 1.442695
    %v1713 = vpow.pop %v1712
    %v1714 = vmul.f32 %v1711, 1.442695
    %v1715 = vpow.pop %v1714
    %v1716 = vadd.f32 %v1713, 1.0
    %v1717 = vadd.f32 %v1715, 1.0
    %v1718 = vrcp.pop %v1716
    %v1719 = vmul.f32 %v1716, %v1718
    %v1720 = vsub.f32 1.0, %v1719
    %v1721 = vmul.f32 %v1718, %v1720
    %v1722 = vadd.f32 %v1718, %v1721
    %vm1723 = vweird.f32 %v1716
    %vm1724 = vweird.f32 %v1718
    %vm1725 = vmor %vm1723, %vm1724
    %v1726 = vsel %vm1725, %v1718, %v1722
    %v1727 = vand.u32 2147483647, %v1716
    %vm1728 = vcmp.eq.f32.partialorder %v1727, 8.507059e+37
    %v1729 = vand.u32 %v1716, 2147483648
    %v1730 = vor.u32 1.1754944e-38, %v1729
    %v1731 = vsel %vm1728, %v1730, %v1726
    %v1732 = vmul.f32 1.0, %v1731
    %v1733 = vrcp.pop %v1717
    %v1734 = vmul.f32 %v1717, %v1733
    %v1735 = vsub.f32 1.0, %v1734
    %v1736 = vmul.f32 %v1733, %v1735
    %v1737 = vadd.f32 %v1733, %v1736
    %vm1738 = vweird.f32 %v1717
    %vm1739 = vweird.f32 %v1733
    %vm1740 = vmor %vm1738, %vm1739
    %v1741 = vsel %vm1740, %v1733, %v1737
    %v1742 = vand.u32 2147483647, %v1717
    %vm1743 = vcmp.eq.f32.partialorder %v1742, 8.507059e+37
    %v1744 = vand.u32 %v1717, 2147483648
    %v1745 = vor.u32 1.1754944e-38, %v1744
    %v1746 = vsel %vm1743, %v1745, %v1741
    %v1747 = vmul.f32 1.0, %v1746
    %v1748 = vtanh.pop %v1709
    %v1750 = vrot.slane %v1645, 6
    %v1752 = vmul.f32 %v1732, %v1750
    %1754 = vrot.lane.b32.xlu0 %v1748, 64
    %v1755 = vpop.permute.xlu0 %1754
    %v1757 = vmul.f32 %v1732, %v1755
    %1759 = vrot.lane.b32.xlu0 %v1757, 64
    %v1760 = vpop.permute.xlu0 %1759
    %v1762 = vadd.f32 %v1752, %v1760
    %v1763 = vtanh.pop %v1762
    %1765 = vrot.lane.b32.xlu0 %v1763, 64
    %v1766 = vpop.permute.xlu0 %1765
    %v1768 = vmul.f32 %v1747, %v1766
    %v1770 = vrot.slane %v1768, 2
    %v1772 = vadd.f32 %v1652, %v1770
    %v1773 = vsel %vm1028, %v1770, 0
    %1775 = vmatpush.msra.mxu0 0.0
    %1776 = vmatpush.msra.mxu0 0.0
    %1777 = vmatpush.msra.mxu0 0.0
    %1778 = vmatpush.msra.mxu0 0.0
    %1779 = vmatpush.msra.mxu0 0.0
    %1780 = vmatpush.msra.mxu0 0.0
    %1781 = vmatpush.msra.mxu0 0.0
    %1782 = vmatpush.msra.mxu0 0.0
    %1783 = vmatpush.msra.mxu0 %v115
    %1784 = vmatpush.msra.mxu0 %v113
    %1785 = vmatpush.msra.mxu0 %v111
    %1786 = vmatpush.msra.mxu0 %v109
    %1787 = vmatpush.msra.mxu0 %v107
    %1788 = vmatpush.msra.mxu0 %v105
    %1789 = vmatpush.msra.mxu0 %v103
    %1790 = vmatpush.msra.mxu0 %v101
    %1791 = vmatmul.f32.gmra.mxu0 %v1773
    %v1792 = vpop.f32.mrf.mxu0
    %v1793 = vadd.f32 0.0, %v1792
    %1794 = vdwg.mxu0
    %1795 = vmatpush.msra.mxu0 0.0
    %1796 = vmatpush.msra.mxu0 0.0
    %1797 = vmatpush.msra.mxu0 0.0
    %1798 = vmatpush.msra.mxu0 0.0
    %1799 = vmatpush.msra.mxu0 0.0
    %1800 = vmatpush.msra.mxu0 0.0
    %1801 = vmatpush.msra.mxu0 0.0
    %1802 = vmatpush.msra.mxu0 0.0
    %1803 = vmatpush.msra.mxu0 %v116
    %1804 = vmatpush.msra.mxu0 %v114
    %1805 = vmatpush.msra.mxu0 %v112
    %1806 = vmatpush.msra.mxu0 %v110
    %1807 = vmatpush.msra.mxu0 %v108
    %1808 = vmatpush.msra.mxu0 %v106
    %1809 = vmatpush.msra.mxu0 %v104
    %1810 = vmatpush.msra.mxu0 %v102
    %1811 = vmatmul.f32.gmra.mxu0 %v1773
    %v1812 = vpop.f32.mrf.mxu0
    %v1813 = vadd.f32 0.0, %v1812
    %1814 = vdwg.mxu0
    %v1817 = vrot.slane %v1793, 4
    %v1818 = vrot.slane %v1813, 4
    %v1821 = vadd.f32 %v1547, %v1817
    %v1822 = vadd.f32 %v1548, %v1818
    %v1823 = vxor.u32 %v1821, 2147483648
    %v1824 = vxor.u32 %v1822, 2147483648
    %v1825 = vmul.f32 %v1823, 1.442695
    %v1826 = vpow.pop %v1825
    %v1827 = vmul.f32 %v1824, 1.442695
    %v1828 = vpow.pop %v1827
    %v1829 = vadd.f32 %v1826, 1.0
    %v1830 = vadd.f32 %v1828, 1.0
    %v1831 = vrcp.pop %v1829
    %v1832 = vmul.f32 %v1829, %v1831
    %v1833 = vsub.f32 1.0, %v1832
    %v1834 = vmul.f32 %v1831, %v1833
    %v1835 = vadd.f32 %v1831, %v1834
    %vm1836 = vweird.f32 %v1829
    %vm1837 = vweird.f32 %v1831
    %vm1838 = vmor %vm1836, %vm1837
    %v1839 = vsel %vm1838, %v1831, %v1835
    %v1840 = vand.u32 2147483647, %v1829
    %vm1841 = vcmp.eq.f32.partialorder %v1840, 8.507059e+37
    %v1842 = vand.u32 %v1829, 2147483648
    %v1843 = vor.u32 1.1754944e-38, %v1842
    %v1844 = vsel %vm1841, %v1843, %v1839
    %v1845 = vmul.f32 1.0, %v1844
    %v1846 = vrcp.pop %v1830
    %v1847 = vmul.f32 %v1830, %v1846
    %v1848 = vsub.f32 1.0, %v1847
    %v1849 = vmul.f32 %v1846, %v1848
    %v1850 = vadd.f32 %v1846, %v1849
    %vm1851 = vweird.f32 %v1830
    %vm1852 = vweird.f32 %v1846
    %vm1853 = vmor %vm1851, %vm1852
    %v1854 = vsel %vm1853, %v1846, %v1850
    %v1855 = vand.u32 2147483647, %v1830
    %vm1856 = vcmp.eq.f32.partialorder %v1855, 8.507059e+37
    %v1857 = vand.u32 %v1830, 2147483648
    %v1858 = vor.u32 1.1754944e-38, %v1857
    %v1859 = vsel %vm1856, %v1858, %v1854
    %v1860 = vmul.f32 1.0, %v1859
    %v1861 = vtanh.pop %v1822
    %v1863 = vrot.slane %v1762, 6
    %v1865 = vmul.f32 %v1845, %v1863
    %1867 = vrot.lane.b32.xlu0 %v1861, 64
    %v1868 = vpop.permute.xlu0 %1867
    %v1870 = vmul.f32 %v1845, %v1868
    %1872 = vrot.lane.b32.xlu0 %v1870, 64
    %v1873 = vpop.permute.xlu0 %1872
    %v1875 = vadd.f32 %v1865, %v1873
    %v1876 = vtanh.pop %v1875
    %1878 = vrot.lane.b32.xlu0 %v1876, 64
    %v1879 = vpop.permute.xlu0 %1878
    %v1881 = vmul.f32 %v1860, %v1879
    %v1883 = vrot.slane %v1881, 4
    %v1885 = vadd.f32 %v1772, %v1883
    %v1886 = vsel %vm1028, %v1883, 0
    %1888 = vmatpush.msra.mxu0 0.0
    %1889 = vmatpush.msra.mxu0 0.0
    %1890 = vmatpush.msra.mxu0 0.0
    %1891 = vmatpush.msra.mxu0 0.0
    %1892 = vmatpush.msra.mxu0 0.0
    %1893 = vmatpush.msra.mxu0 0.0
    %1894 = vmatpush.msra.mxu0 0.0
    %1895 = vmatpush.msra.mxu0 0.0
    %1896 = vmatpush.msra.mxu0 %v115
    %1897 = vmatpush.msra.mxu0 %v113
    %1898 = vmatpush.msra.mxu0 %v111
    %1899 = vmatpush.msra.mxu0 %v109
    %1900 = vmatpush.msra.mxu0 %v107
    %1901 = vmatpush.msra.mxu0 %v105
    %1902 = vmatpush.msra.mxu0 %v103
    %1903 = vmatpush.msra.mxu0 %v101
    %1904 = vmatmul.f32.gmra.mxu0 %v1886
    %v1905 = vpop.f32.mrf.mxu0
    %v1906 = vadd.f32 0.0, %v1905
    %1907 = vdwg.mxu0
    %1908 = vmatpush.msra.mxu0 0.0
    %1909 = vmatpush.msra.mxu0 0.0
    %1910 = vmatpush.msra.mxu0 0.0
    %1911 = vmatpush.msra.mxu0 0.0
    %1912 = vmatpush.msra.mxu0 0.0
    %1913 = vmatpush.msra.mxu0 0.0
    %1914 = vmatpush.msra.mxu0 0.0
    %1915 = vmatpush.msra.mxu0 0.0
    %1916 = vmatpush.msra.mxu0 %v116
    %1917 = vmatpush.msra.mxu0 %v114
    %1918 = vmatpush.msra.mxu0 %v112
    %1919 = vmatpush.msra.mxu0 %v110
    %1920 = vmatpush.msra.mxu0 %v108
    %1921 = vmatpush.msra.mxu0 %v106
    %1922 = vmatpush.msra.mxu0 %v104
    %1923 = vmatpush.msra.mxu0 %v102
    %1924 = vmatmul.f32.gmra.mxu0 %v1886
    %v1925 = vpop.f32.mrf.mxu0
    %v1926 = vadd.f32 0.0, %v1925
    %1927 = vdwg.mxu0
    %v1930 = vrot.slane %v1906, 2
    %v1931 = vrot.slane %v1926, 2
    %v1934 = vadd.f32 %v1657, %v1930
    %v1935 = vadd.f32 %v1658, %v1931
    %v1936 = vxor.u32 %v1934, 2147483648
    %v1937 = vxor.u32 %v1935, 2147483648
    %v1938 = vmul.f32 %v1936, 1.442695
    %v1939 = vpow.pop %v1938
    %v1940 = vmul.f32 %v1937, 1.442695
    %v1941 = vpow.pop %v1940
    %v1942 = vadd.f32 %v1939, 1.0
    %v1943 = vadd.f32 %v1941, 1.0
    %v1944 = vrcp.pop %v1942
    %v1945 = vmul.f32 %v1942, %v1944
    %v1946 = vsub.f32 1.0, %v1945
    %v1947 = vmul.f32 %v1944, %v1946
    %v1948 = vadd.f32 %v1944, %v1947
    %vm1949 = vweird.f32 %v1942
    %vm1950 = vweird.f32 %v1944
    %vm1951 = vmor %vm1949, %vm1950
    %v1952 = vsel %vm1951, %v1944, %v1948
    %v1953 = vand.u32 2147483647, %v1942
    %vm1954 = vcmp.eq.f32.partialorder %v1953, 8.507059e+37
    %v1955 = vand.u32 %v1942, 2147483648
    %v1956 = vor.u32 1.1754944e-38, %v1955
    %v1957 = vsel %vm1954, %v1956, %v1952
    %v1958 = vmul.f32 1.0, %v1957
    %v1959 = vrcp.pop %v1943
    %v1960 = vmul.f32 %v1943, %v1959
    %v1961 = vsub.f32 1.0, %v1960
    %v1962 = vmul.f32 %v1959, %v1961
    %v1963 = vadd.f32 %v1959, %v1962
    %vm1964 = vweird.f32 %v1943
    %vm1965 = vweird.f32 %v1959
    %vm1966 = vmor %vm1964, %vm1965
    %v1967 = vsel %vm1966, %v1959, %v1963
    %v1968 = vand.u32 2147483647, %v1943
    %vm1969 = vcmp.eq.f32.partialorder %v1968, 8.507059e+37
    %v1970 = vand.u32 %v1943, 2147483648
    %v1971 = vor.u32 1.1754944e-38, %v1970
    %v1972 = vsel %vm1969, %v1971, %v1967
    %v1973 = vmul.f32 1.0, %v1972
    %v1974 = vtanh.pop %v1935
    %v1976 = vrot.slane %v1875, 6
    %v1978 = vmul.f32 %v1958, %v1976
    %1980 = vrot.lane.b32.xlu0 %v1974, 64
    %v1981 = vpop.permute.xlu0 %1980
    %v1983 = vmul.f32 %v1958, %v1981
    %1985 = vrot.lane.b32.xlu0 %v1983, 64
    %v1986 = vpop.permute.xlu0 %1985
    %v1988 = vadd.f32 %v1978, %v1986
    %v1989 = vtanh.pop %v1988
    %1991 = vrot.lane.b32.xlu0 %v1989, 64
    %v1992 = vpop.permute.xlu0 %1991
    %v1994 = vmul.f32 %v1973, %v1992
    %v1996 = vrot.slane %v1994, 6
    %v1998 = vadd.f32 %v1885, %v1996
    %v1999 = vsel %vm82, 1, 0
    %v2000 = vperm.slane %v1999, 0
    %vm2001 = vcmp.eq.s32.totalorder %v2000, 1
    %v2002 = vsel %vm2001, %v1193, %v1996
    %v2003 = vrot.slane %v1881, 2
    %v2005 = vsel %vm2001, %v1310, %v2003
    %v2006 = vrot.slane %v1768, 6
    %v2008 = vsel %vm2001, %v1423, %v2006
    %v2009 = vrot.slane %v1651, 2
    %v2011 = vsel %vm2001, %v1536, %v2009
    %v2012 = vsel %vm2001, %v1651, %v1538
    %v2013 = vrot.slane %v1423, 2
    %v2015 = vsel %vm2001, %v1768, %v2013
    %v2016 = vrot.slane %v1310, 6
    %v2018 = vsel %vm2001, %v1881, %v2016
    %v2019 = vrot.slane %v1193, 2
    %v2021 = vsel %vm2001, %v1994, %v2019
    %vm2022 = vcmask 1041408
    %v2023 = vsel %vm2022, %v2002, %v2005
    %vm2024 = vcmask 1043456
    %v2025 = vsel %vm2024, %v2023, %v2008
    %vm2026 = vcmask 1045504
    %v2027 = vsel %vm2026, %v2025, %v2011
    %v2028 = vsel %vm2022, %v2012, %v2015
    %v2029 = vsel %vm2024, %v2028, %v2018
    %v2030 = vsel %vm2026, %v2029, %v2021
    %v2031 = vperm.slane %v64, 0
    %v2033 = vsel %vm1028, %v2027, 0
    %v2036 = vsel %vm1028, %v2030, 0
    %2038 = vmatpush.msra.mxu0 0.0
    %2039 = vmatpush.msra.mxu0 0.0
    %2040 = vmatpush.msra.mxu0 0.0
    %2041 = vmatpush.msra.mxu0 0.0
    %2042 = vmatpush.msra.mxu0 0.0
    %2043 = vmatpush.msra.mxu0 0.0
    %2044 = vmatpush.msra.mxu0 0.0
    %2045 = vmatpush.msra.mxu0 0.0
    %2046 = vmatpush.msra.mxu0 %v63
    %2047 = vmatpush.msra.mxu0 %v62
    %2048 = vmatpush.msra.mxu0 %v61
    %2049 = vmatpush.msra.mxu0 %v60
    %2050 = vmatpush.msra.mxu0 %v59
    %2051 = vmatpush.msra.mxu0 %v58
    %2052 = vmatpush.msra.mxu0 %v57
    %2053 = vmatpush.msra.mxu0 %v56
    %2054 = vmatmul.f32.gmra.mxu0 %v2033
    %v2055 = vpop.f32.mrf.mxu0
    %v2056 = vadd.f32 %v2031, %v2055
    %2057 = vmatmul.f32.gmra.mxu0 %v2036
    %v2058 = vpop.f32.mrf.mxu0
    %v2059 = vadd.f32 %v2031, %v2058
    %2060 = vdwg.mxu0
    %v2061 = vmul.f32 %v64, 8.0
    %v2062 = vperm.slane %v2061, 0
    %v2064 = vsel %vm1028, %v1998, 0
    %2066 = vmatpush.msra.mxu0 0.0
    %2067 = vmatpush.msra.mxu0 0.0
    %2068 = vmatpush.msra.mxu0 0.0
    %2069 = vmatpush.msra.mxu0 0.0
    %2070 = vmatpush.msra.mxu0 0.0
    %2071 = vmatpush.msra.mxu0 0.0
    %2072 = vmatpush.msra.mxu0 0.0
    %2073 = vmatpush.msra.mxu0 0.0
    %2074 = vmatpush.msra.mxu0 %v63
    %2075 = vmatpush.msra.mxu0 %v62
    %2076 = vmatpush.msra.mxu0 %v61
    %2077 = vmatpush.msra.mxu0 %v60
    %2078 = vmatpush.msra.mxu0 %v59
    %2079 = vmatpush.msra.mxu0 %v58
    %2080 = vmatpush.msra.mxu0 %v57
    %2081 = vmatpush.msra.mxu0 %v56
    %2082 = vmatmul.f32.gmra.mxu0 %v2064
    %v2083 = vpop.f32.mrf.mxu0
    %v2084 = vadd.f32 %v2062, %v2083
    %2085 = vdwg.mxu0
    %v2086 = vperm.slane %v73, 0
    %v2088 = vsel %vm1028, %v2084, 0
    %2090 = vmatpush.msra.mxu0 0.0
    %2091 = vmatpush.msra.mxu0 0.0
    %2092 = vmatpush.msra.mxu0 0.0
    %2093 = vmatpush.msra.mxu0 0.0
    %2094 = vmatpush.msra.mxu0 0.0
    %2095 = vmatpush.msra.mxu0 0.0
    %2096 = vmatpush.msra.mxu0 0.0
    %2097 = vmatpush.msra.mxu0 0.0
    %2098 = vmatpush.msra.mxu0 %v72
    %2099 = vmatpush.msra.mxu0 %v71
    %2100 = vmatpush.msra.mxu0 %v70
    %2101 = vmatpush.msra.mxu0 %v69
    %2102 = vmatpush.msra.mxu0 %v68
    %2103 = vmatpush.msra.mxu0 %v67
    %2104 = vmatpush.msra.mxu0 %v66
    %2105 = vmatpush.msra.mxu0 %v65
    %2106 = vmatmul.f32.gmra.mxu0 %v2088
    %v2107 = vpop.f32.mrf.mxu0
    %v2108 = vadd.f32 %v2086, %v2107
    %2109 = vdwg.mxu0
    %vm2110 = vcmp.gt.f32.partialorder %v2108, 0.0
    %v2111 = vmul.f32 %v2108, 0.2
    %v2112 = vsel %vm2110, %v2108, %v2111
    %v2113 = vperm.slane %v78, 0
    %v2115 = vsel %vm301, %v2112, 0
    %2117 = vmatpush.msra.mxu0 0.0
    %2118 = vmatpush.msra.mxu0 0.0
    %2119 = vmatpush.msra.mxu0 0.0
    %2120 = vmatpush.msra.mxu0 0.0
    %2121 = vmatpush.msra.mxu0 0.0
    %2122 = vmatpush.msra.mxu0 0.0
    %2123 = vmatpush.msra.mxu0 0.0
    %2124 = vmatpush.msra.mxu0 0.0
    %2125 = vmatpush.msra.mxu0 0.0
    %2126 = vmatpush.msra.mxu0 0.0
    %2127 = vmatpush.msra.mxu0 0.0
    %2128 = vmatpush.msra.mxu0 0.0
    %2129 = vmatpush.msra.mxu0 %v77
    %2130 = vmatpush.msra.mxu0 %v76
    %2131 = vmatpush.msra.mxu0 %v75
    %2132 = vmatpush.msra.mxu0 %v74
    %2133 = vmatmul.f32.gmra.mxu0 %v2115
    %v2134 = vpop.f32.mrf.mxu0
    %v2135 = vadd.f32 %v2113, %v2134
    %2136 = vdwg.mxu0
    %2139 = vrot.lane.b32.xlu0 %v2056, 64
    %v2140 = vpop.permute.xlu0 %2139
    %2141 = vrot.lane.b32.xlu0 %v2059, 64
    %v2142 = vpop.permute.xlu0 %2141
    %v2145 = vsel %vm1028, %v1021, %v2140
    %v2146 = vsel %vm1028, %v1022, %v2142
    %2147 = vst [vmem:[%s4] sm:$0xff] %v2145
    %2148 = vst [vmem:[%s4 + $0x8] sm:$0xff] %v2146
    %2150 = vrot.lane.b32.xlu0 %v2135, 64
    %v2151 = vpop.permute.xlu0 %2150
    %v2153 = vsel %vm1028, %v2084, %v2151
    %2154 = vst [vmem:[%s4 + $0x10] sm:$0x3] %v2153
    // Predicated region
    $region26: #{shared_model_forward.1} parent=1 // pred_check
      _
    $region27: #{shared_model_forward.1} parent=1 // pred_check_branch
      %2156 = sbr.rel (0) target = $region29
    $region28: #{shared_model_forward.1} parent=1 // pred_region
      _
    $region29: #{shared_model_forward.1} parent=1 // pred_fallthru
      _
    // Predicated region
    $region30: #{shared_model_forward.1} parent=1 // pred_check
      _
    $region31: #{shared_model_forward.1} parent=1 // pred_check_branch
      %2158 = sbr.rel (0) target = $region33
    $region32: #{shared_model_forward.1} parent=1 // pred_region
      _
    $region33: #{shared_model_forward.1} parent=1 // pred_fallthru
      _
    %2159 = vsyncpa [#allocation3], 1
    %2160 = vsyncpa [#allocation5], 1

</llo_original>
